<compile_context>
chip_gen: v7x
topology: tpu7x:2x2x1
jax: 0.10.0
libtpu: 0.0.40
codegen_flags: <defaults>
</compile_context>

<pallas_src>
import math

import jax
import jax.numpy as jnp
from jax import lax
from jax.experimental import pallas as pl
from jax.experimental.pallas import tpu as pltpu


# --------------------------------------------------------------------------
# small helpers
# --------------------------------------------------------------------------
_F32, _BF16, _I8 = 4, 2, 1
_DEFAULT_VMEM_LIMIT = 32 * 1024 * 1024
_VMEM_HEADROOM = 8 * 1024 * 1024


def _round_up(a, b):
    return (a + b - 1) // b * b


def _bspec(shape, index_map, buffers=None):
    """BlockSpec with an explicit pipeline buffer count when supported
    (single-buffer the grid-invariant operands, deeper-buffer the adj stream);
    falls back to a plain BlockSpec otherwise."""
    if buffers is None:
        return pl.BlockSpec(shape, index_map)
    try:
        return pl.BlockSpec(shape, index_map, pipeline_mode=pl.Buffered(buffers))
    except Exception:
        return pl.BlockSpec(shape, index_map)


def _device_info():
    kind = ""
    try:
        kind = jax.devices()[0].device_kind.lower()
    except Exception:
        pass
    vmem_cap = 64 * 1024 * 1024          # conservative fallback (v7x per-TC)
    try:
        vmem_cap = int(pltpu.get_tpu_info().vmem_capacity_bytes)
    except Exception:
        pass
    return vmem_cap, ("v5" in kind)


def _pass2_vmem_estimate(np_, tm, d_out, adj_bufs):
    resident = np_ * d_out * _BF16 + np_ * _F32 + 2 * d_out * _F32   # h, p_src, ln params
    per_step = (adj_bufs * tm * np_ * _I8          # adjacency tiles
                + 2 * tm * _F32                    # p_dst
                + 2 * tm * d_out * _F32            # residual
                + 2 * tm * d_out * _F32)           # output
    return int((resident + per_step) * 1.25) + (2 << 20)


def _pass1_vmem_estimate(tm, d_in, d_out, has_proj):
    resident = d_in * d_out * _F32 * (2 if has_proj else 1) + 2 * d_out * _F32
    per_step = 2 * (tm * d_in * _F32 + tm * d_out * _BF16 + 2 * tm * _F32
                    + tm * d_out * _F32)
    return int((resident + per_step) * 1.25) + (2 << 20)


def _vmem_limit(est, vmem_cap):
    if est <= _DEFAULT_VMEM_LIMIT:
        return None
    # TODO(synk): if est exceeds the device capacity a src-axis (K) tiling +
    # online-softmax variant is required; not implemented here.
    return int(min(est, max(vmem_cap - _VMEM_HEADROOM, _DEFAULT_VMEM_LIMIT)))


def _pick_tm(n, d_out, vmem_cap, is_v5, adj_bufs):
    if is_v5:
        return 128          # v5e MXU is 4x128^2; M=128 already fills it
    for tm in (256, 128):   # v6e/v7x: 2x256^2 MXU -> prefer TM=256 when it fits
        np_ = _round_up(max(n, tm), tm)
        if _pass2_vmem_estimate(np_, tm, d_out, adj_bufs) <= vmem_cap - _VMEM_HEADROOM:
            return tm
    return 128


# --------------------------------------------------------------------------
# Pass 1: node-wise precompute (h bf16, p_src, p_dst, residual), tiled.
# --------------------------------------------------------------------------
def _precompute_body(x_ref, w1_ref, wsrc_ref, wdst_ref, wp_ref,
                     h_ref, psrc_ref, pdst_ref, resid_ref):
    x = x_ref[...]                                                    # (TM, Din)
    h = jnp.dot(x, w1_ref[...], preferred_element_type=jnp.float32)  # (TM, Dout)
    h_ref[...] = h.astype(jnp.bfloat16)                              # bf16 resident copy
    # p_src[s] = h[s].w_src laid out along lanes (1, TM);
    # p_dst[d] = h[d].w_dst laid out along sublanes (TM, 1).
    psrc_ref[...] = lax.dot_general(wsrc_ref[...], h, (((1,), (1,)), ((), ())),
                                    preferred_element_type=jnp.float32)
    pdst_ref[...] = lax.dot_general(h, wdst_ref[...], (((1,), (1,)), ((), ())),
                                    preferred_element_type=jnp.float32)
    if wp_ref is not None:
        resid_ref[...] = jnp.dot(x, wp_ref[...], preferred_element_type=jnp.float32)
    else:
        resid_ref[...] = x                                            # Din == Dout


def make_precompute_kernel(has_proj):
    if has_proj:
        def kernel(x_ref, w1_ref, wsrc_ref, wdst_ref, wp_ref,
                   h_ref, psrc_ref, pdst_ref, resid_ref):
            _precompute_body(x_ref, w1_ref, wsrc_ref, wdst_ref, wp_ref,
                             h_ref, psrc_ref, pdst_ref, resid_ref)
    else:
        def kernel(x_ref, w1_ref, wsrc_ref, wdst_ref,
                   h_ref, psrc_ref, pdst_ref, resid_ref):
            _precompute_body(x_ref, w1_ref, wsrc_ref, wdst_ref, None,
                             h_ref, psrc_ref, pdst_ref, resid_ref)
    return kernel


# --------------------------------------------------------------------------
# Pass 2: per-destination-tile attention + aggregation + residual + LayerNorm
# --------------------------------------------------------------------------
def attention_kernel(adj_ref, psrc_ref, pdst_ref, h_ref, resid_ref,
                     gamma_ref, beta_ref, out_ref):
    mask = adj_ref[...] > 0                                 # (TM, Np) int8 mask stream

    # score(s -> d) = leaky_relu(p_dst[d] + p_src[s], 0.2)
    scores = pdst_ref[...] + psrc_ref[...]                  # (TM, Np) broadcast add
    scores = jnp.maximum(scores, 0.2 * scores)              # leaky relu without select

    neg_big = jnp.float32(-1e30)
    masked = jnp.where(mask, scores, neg_big)
    row_max = jnp.max(masked, axis=1, keepdims=True)
    exp_s = jnp.where(mask, jnp.exp(masked - row_max), 0.0)
    denom = jnp.sum(exp_s, axis=1, keepdims=True)
    denom_safe = jnp.where(denom > 0.0, denom, 1.0)

    # TODO(synk): F.dropout on alpha / output omitted (eval-mode identity).

    # Aggregation on the MXU with bf16 inputs / f32 accumulation; softmax
    # normalization is deferred to an O(TM, Dout) scale after the matmul
    # (EUP reciprocal instead of a VPU divide / O(TM, Np) multiply).
    h_agg = jnp.dot(exp_s.astype(jnp.bfloat16), h_ref[...],
                    preferred_element_type=jnp.float32)
    h_agg = h_agg * pl.reciprocal(denom_safe, approx=True)

    h_final = h_agg + resid_ref[...]

    # LayerNorm over features (eps = 1e-5, biased variance) + affine.
    mean = jnp.mean(h_final, axis=1, keepdims=True)
    centered = h_final - mean
    var = jnp.mean(centered * centered, axis=1, keepdims=True)
    normed = centered * lax.rsqrt(var + 1e-5)
    out_ref[...] = normed * gamma_ref[...] + beta_ref[...]


# --------------------------------------------------------------------------
# Wrapper
# --------------------------------------------------------------------------
def simple_attention_layer(x, edge_index, params, *, tm=None):
    """Pads N, builds the int8 adjacency mask and runs the two kernels."""
    N, d_in = x.shape
    if N == 0:
        return x
    d_out = params["w_lin"].shape[0]
    has_proj = params["w_proj"] is not None

    vmem_cap, is_v5 = _device_info()
    adj_bufs = 3 if is_v5 else 2        # v5e: lowest HBM BW -> deeper adj buffering
    TM = tm if tm is not None else _pick_tm(N, d_out, vmem_cap, is_v5, adj_bufs)
    Np = _round_up(max(N, TM), TM)      # lane-dense padding (multiple of 128)

    x_pad = jnp.pad(x.astype(jnp.float32), ((0, Np - N), (0, 0)))

    src = edge_index[0]
    dst = edge_index[1]
    # int8 mask built directly (no f32 scatter + cast): quarter of the f32
    # O(N^2) HBM traffic and half the bf16 traffic.
    # TODO(synk): duplicate edges collapse to one mask entry (multigraphs differ);
    # sparse block-skip path (PrefetchScalarGridSpec + online softmax) not implemented.
    adj = jnp.zeros((Np, Np), jnp.int8).at[dst, src].set(jnp.int8(1))

    w1_t = params["w_lin"].T.astype(jnp.float32)              # (Din, Dout)
    wa = params["w_attn"].astype(jnp.float32)                 # (1, 2*Dout)
    wa_src = wa[:, :d_out]                                    # (1, Dout)
    wa_dst = wa[:, d_out:]                                    # (1, Dout)
    gamma = params["ln_weight"].reshape(1, d_out).astype(jnp.float32)
    beta = params["ln_bias"].reshape(1, d_out).astype(jnp.float32)

    grid = (Np // TM,)

    # ---- pass 1: node-wise precompute, tiled & pipelined over node rows ----
    p1_in_specs = [
        pl.BlockSpec((TM, d_in), lambda i: (i, 0)),                   # x tile
        _bspec((d_in, d_out), lambda i: (0, 0), buffers=1),           # W_lin^T (resident)
        _bspec((1, d_out), lambda i: (0, 0), buffers=1),              # w_src
        _bspec((1, d_out), lambda i: (0, 0), buffers=1),              # w_dst
    ]
    p1_args = [x_pad, w1_t, wa_src, wa_dst]
    if has_proj:
        wp_t = params["w_proj"].T.astype(jnp.float32)                 # (Din, Dout)
        p1_in_specs.append(_bspec((d_in, d_out), lambda i: (0, 0), buffers=1))
        p1_args.append(wp_t)

    h, p_src, p_dst, resid = pl.pallas_call(
        make_precompute_kernel(has_proj),
        out_shape=(jax.ShapeDtypeStruct((Np, d_out), jnp.bfloat16),
                   jax.ShapeDtypeStruct((1, Np), jnp.float32),
                   jax.ShapeDtypeStruct((Np, 1), jnp.float32),
                   jax.ShapeDtypeStruct((Np, d_out), jnp.float32)),
        grid=grid,
        in_specs=p1_in_specs,
        out_specs=(pl.BlockSpec((TM, d_out), lambda i: (i, 0)),
                   pl.BlockSpec((1, TM), lambda i: (0, i)),
                   pl.BlockSpec((TM, 1), lambda i: (i, 0)),
                   pl.BlockSpec((TM, d_out), lambda i: (i, 0))),
        compiler_params=pltpu.CompilerParams(
            dimension_semantics=("parallel",),
            vmem_limit_bytes=_vmem_limit(
                _pass1_vmem_estimate(TM, d_in, d_out, has_proj), vmem_cap)),
    )(*p1_args)

    # ---- pass 2: attention gridded over destination-row tiles --------------
    p2_in_specs = [
        _bspec((TM, Np), lambda i: (i, 0), buffers=adj_bufs),         # adj (int8 stream)
        _bspec((1, Np), lambda i: (0, 0), buffers=1),                 # p_src (resident)
        pl.BlockSpec((TM, 1), lambda i: (i, 0)),                      # p_dst tile
        _bspec((Np, d_out), lambda i: (0, 0), buffers=1),             # h (bf16, resident)
        pl.BlockSpec((TM, d_out), lambda i: (i, 0)),                  # residual tile
        _bspec((1, d_out), lambda i: (0, 0), buffers=1),              # gamma
        _bspec((1, d_out), lambda i: (0, 0), buffers=1),              # beta
    ]
    out = pl.pallas_call(
        attention_kernel,
        out_shape=jax.ShapeDtypeStruct((Np, d_out), jnp.float32),
        grid=grid,
        in_specs=p2_in_specs,
        out_specs=pl.BlockSpec((TM, d_out), lambda i: (i, 0)),
        compiler_params=pltpu.CompilerParams(
            dimension_semantics=("parallel",),
            vmem_limit_bytes=_vmem_limit(
                _pass2_vmem_estimate(Np, TM, d_out, adj_bufs), vmem_cap)),
    )(adj, p_src, p_dst, h, resid, gamma, beta)
    return out[:N]


# --------------------------------------------------------------------------
# Utilities / reference
# --------------------------------------------------------------------------
def xavier_uniform(key, shape, gain):
    fan_out, fan_in = shape
    bound = gain * math.sqrt(6.0 / (fan_in + fan_out))
    return jax.random.uniform(key, shape, jnp.float32, -bound, bound)


def reference(x, edge_index, params):
    """Pure-JAX reference mirroring the PyTorch scatter-based forward (eval mode)."""
    N = x.shape[0]
    h = x @ params["w_lin"].T
    src, dst = edge_index[0], edge_index[1]
    e_in = jnp.concatenate([h[src], h[dst]], axis=-1)
    raw = (e_in @ params["w_attn"].T)[:, 0]
    raw = jnp.where(raw >= 0, raw, 0.2 * raw)
    seg_max = jax.ops.segment_max(raw, dst, num_segments=N)
    ex = jnp.exp(raw - seg_max[dst])
    denom = jax.ops.segment_sum(ex, dst, num_segments=N)
    alpha = ex / denom[dst]
    msgs = h[src] * alpha[:, None]
    agg = jax.ops.segment_sum(msgs, dst, num_segments=N)
    residual = x @ params["w_proj"].T if params["w_proj"] is not None else x
    hf = agg + residual
    mean = hf.mean(-1, keepdims=True)
    var = ((hf - mean) ** 2).mean(-1, keepdims=True)
    return (hf - mean) / jnp.sqrt(var + 1e-5) * params["ln_weight"] + params["ln_bias"]


if __name__ == "__main__":
    key = jax.random.PRNGKey(0)
    gain = math.sqrt(2.0)  # nn.init.calculate_gain('relu')

    # Two configs: projection residual (Din != Dout) and identity residual
    # (Din == Dout).  N=300 pads to >1 destination-row tile for both TM=128
    # and TM=256, exercising the streamed-adjacency pipeline and the padding.
    for (N, d_in, d_out) in [(300, 64, 128), (300, 128, 128)]:
        key, k_x, k1, k2, k3 = jax.random.split(key, 5)
        x = jax.random.normal(k_x, (N, d_in), jnp.float32)

        # Deterministic unique edge list; node 0 has no incoming edges to
        # exercise the zero-aggregation path.
        src_list, dst_list = [], []
        for d in range(N):
            if d == 0:
                continue
            for off in (1, 3, 5):
                src_list.append((d + off) % N)
                dst_list.append(d)
        edge_index = jnp.array([src_list, dst_list], dtype=jnp.int32)

        params = {
            "w_lin": xavier_uniform(k1, (d_out, d_in), gain),
            "w_attn": xavier_uniform(k2, (1, 2 * d_out), gain),
            "w_proj": (xavier_uniform(k3, (d_out, d_in), gain)
                       if d_in != d_out else None),
            "ln_weight": jnp.ones((d_out,), jnp.float32),
            "ln_bias": jnp.zeros((d_out,), jnp.float32),
        }

        out = jax.block_until_ready(simple_attention_layer(x, edge_index, params))
        ref = reference(x, edge_index, params)
        assert out.shape == (N, d_out)
        err = float(jnp.abs(out - ref).max())
        # bf16 MXU aggregation (intentional, per perf review) -> 2e-2 tolerance.
        assert jnp.allclose(out, ref, atol=2e-2, rtol=2e-2), err

    print("KERNEL_OK")
</pallas_src>

<mosaic_0001>
module attributes {stable_mosaic.version = 11 : i64} {
  func.func @kernel(%arg0: i32, %arg1: memref<256x64xf32, #tpu.memory_space<vmem>>, %arg2: memref<64x128xf32, #tpu.memory_space<vmem>>, %arg3: memref<1x128xf32, #tpu.memory_space<vmem>>, %arg4: memref<1x128xf32, #tpu.memory_space<vmem>>, %arg5: memref<64x128xf32, #tpu.memory_space<vmem>>, %arg6: memref<256x128xbf16, #tpu.memory_space<vmem>>, %arg7: memref<1x256xf32, #tpu.memory_space<vmem>>, %arg8: memref<256x1xf32, #tpu.memory_space<vmem>>, %arg9: memref<256x128xf32, #tpu.memory_space<vmem>>) attributes {dimension_semantics = [#tpu.dimension_semantics<parallel>], iteration_bounds = array<i64: 2>, scalar_prefetch = 0 : i64, scratch_operands = 0 : i64, tpu.core_type = #tpu.core_type<tc>, window_params = [{transform_indices = @transform_0, window_bounds = array<i64: 256, 64>}, {pipeline_mode = #tpu.pipeline_mode<synchronous>, transform_indices = @transform_1, window_bounds = array<i64: 64, 128>}, {pipeline_mode = #tpu.pipeline_mode<synchronous>, transform_indices = @transform_2, window_bounds = array<i64: 1, 128>}, {pipeline_mode = #tpu.pipeline_mode<synchronous>, transform_indices = @transform_3, window_bounds = array<i64: 1, 128>}, {pipeline_mode = #tpu.pipeline_mode<synchronous>, transform_indices = @transform_4, window_bounds = array<i64: 64, 128>}, {transform_indices = @transform_5, window_bounds = array<i64: 256, 128>}, {transform_indices = @transform_6, window_bounds = array<i64: 1, 256>}, {transform_indices = @transform_7, window_bounds = array<i64: 256, 1>}, {transform_indices = @transform_8, window_bounds = array<i64: 256, 128>}]} {
    %c0 = arith.constant 0 : index
    %c0_0 = arith.constant 0 : index
    %0 = vector.load %arg1[%c0, %c0_0] : memref<256x64xf32, #tpu.memory_space<vmem>>, vector<256x64xf32>
    %c0_1 = arith.constant 0 : index
    %c0_2 = arith.constant 0 : index
    %1 = vector.load %arg2[%c0_1, %c0_2] : memref<64x128xf32, #tpu.memory_space<vmem>>, vector<64x128xf32>
    %cst = arith.constant dense<0.000000e+00> : vector<256x128xf32>
    %2 = tpu.matmul %0, %1, %cst {dimension_numbers = #tpu.dot_dimension_numbers<[1], [0], [0], [1], [0, 0, 1, 1], [], []>} : vector<256x64xf32>, vector<64x128xf32>, vector<256x128xf32> -> vector<256x128xf32>
    %3 = arith.truncf %2 : vector<256x128xf32> to vector<256x128xbf16>
    %c0_3 = arith.constant 0 : index
    %c0_4 = arith.constant 0 : index
    %4 = vector.load %arg6[%c0_3, %c0_4] : memref<256x128xbf16, #tpu.memory_space<vmem>>, vector<256x128xbf16>
    tpu.vector_store %arg6[%c0_3, %c0_4], %3 {strides = array<i32>} : memref<256x128xbf16, #tpu.memory_space<vmem>>, vector<256x128xbf16>,
    %c0_5 = arith.constant 0 : index
    %c0_6 = arith.constant 0 : index
    %5 = vector.load %arg3[%c0_5, %c0_6] : memref<1x128xf32, #tpu.memory_space<vmem>>, vector<1x128xf32>
    %cst_7 = arith.constant dense<0.000000e+00> : vector<1x256xf32>
    %6 = tpu.matmul %5, %2, %cst_7 {dimension_numbers = #tpu.dot_dimension_numbers<[1], [1], [0], [0], [0, 0, 1, 0], [], []>} : vector<1x128xf32>, vector<256x128xf32>, vector<1x256xf32> -> vector<1x256xf32>
    %c0_8 = arith.constant 0 : index
    %c0_9 = arith.constant 0 : index
    %7 = vector.load %arg7[%c0_8, %c0_9] : memref<1x256xf32, #tpu.memory_space<vmem>>, vector<1x256xf32>
    tpu.vector_store %arg7[%c0_8, %c0_9], %6 {strides = array<i32>} : memref<1x256xf32, #tpu.memory_space<vmem>>, vector<1x256xf32>,
    %c0_10 = arith.constant 0 : index
    %c0_11 = arith.constant 0 : index
    %8 = vector.load %arg4[%c0_10, %c0_11] : memref<1x128xf32, #tpu.memory_space<vmem>>, vector<1x128xf32>
    %cst_12 = arith.constant dense<0.000000e+00> : vector<256x1xf32>
    %9 = tpu.matmul %2, %8, %cst_12 {dimension_numbers = #tpu.dot_dimension_numbers<[1], [1], [0], [0], [0, 0, 1, 0], [], []>} : vector<256x128xf32>, vector<1x128xf32>, vector<256x1xf32> -> vector<256x1xf32>
    %c0_13 = arith.constant 0 : index
    %c0_14 = arith.constant 0 : index
    %10 = vector.load %arg8[%c0_13, %c0_14] : memref<256x1xf32, #tpu.memory_space<vmem>>, vector<256x1xf32>
    tpu.vector_store %arg8[%c0_13, %c0_14], %9 {strides = array<i32>} : memref<256x1xf32, #tpu.memory_space<vmem>>, vector<256x1xf32>,
    %c0_15 = arith.constant 0 : index
    %c0_16 = arith.constant 0 : index
    %11 = vector.load %arg5[%c0_15, %c0_16] : memref<64x128xf32, #tpu.memory_space<vmem>>, vector<64x128xf32>
    %cst_17 = arith.constant dense<0.000000e+00> : vector<256x128xf32>
    %12 = tpu.matmul %0, %11, %cst_17 {dimension_numbers = #tpu.dot_dimension_numbers<[1], [0], [0], [1], [0, 0, 1, 1], [], []>} : vector<256x64xf32>, vector<64x128xf32>, vector<256x128xf32> -> vector<256x128xf32>
    %c0_18 = arith.constant 0 : index
    %c0_19 = arith.constant 0 : index
    %13 = vector.load %arg9[%c0_18, %c0_19] : memref<256x128xf32, #tpu.memory_space<vmem>>, vector<256x128xf32>
    tpu.vector_store %arg9[%c0_18, %c0_19], %12 {strides = array<i32>} : memref<256x128xf32, #tpu.memory_space<vmem>>, vector<256x128xf32>,
    return
  }
  func.func @transform_0(%arg0: i32) -> (i32, i32) {
    %c0_i32 = arith.constant 0 : i32
    %c0_i32_0 = arith.constant 0 : i32
    return %arg0, %c0_i32 : i32, i32
  }
  func.func @transform_1(%arg0: i32) -> (i32, i32) {
    %c0_i32 = arith.constant 0 : i32
    %c0_i32_0 = arith.constant 0 : i32
    %c0_i32_1 = arith.constant 0 : i32
    return %c0_i32, %c0_i32_0 : i32, i32
  }
  func.func @transform_2(%arg0: i32) -> (i32, i32) {
    %c0_i32 = arith.constant 0 : i32
    %c0_i32_0 = arith.constant 0 : i32
    %c0_i32_1 = arith.constant 0 : i32
    return %c0_i32, %c0_i32_0 : i32, i32
  }
  func.func @transform_3(%arg0: i32) -> (i32, i32) {
    %c0_i32 = arith.constant 0 : i32
    %c0_i32_0 = arith.constant 0 : i32
    %c0_i32_1 = arith.constant 0 : i32
    return %c0_i32, %c0_i32_0 : i32, i32
  }
  func.func @transform_4(%arg0: i32) -> (i32, i32) {
    %c0_i32 = arith.constant 0 : i32
    %c0_i32_0 = arith.constant 0 : i32
    %c0_i32_1 = arith.constant 0 : i32
    return %c0_i32, %c0_i32_0 : i32, i32
  }
  func.func @transform_5(%arg0: i32) -> (i32, i32) {
    %c0_i32 = arith.constant 0 : i32
    %c0_i32_0 = arith.constant 0 : i32
    return %arg0, %c0_i32 : i32, i32
  }
  func.func @transform_6(%arg0: i32) -> (i32, i32) {
    %c0_i32 = arith.constant 0 : i32
    %c0_i32_0 = arith.constant 0 : i32
    return %c0_i32, %arg0 : i32, i32
  }
  func.func @transform_7(%arg0: i32) -> (i32, i32) {
    %c0_i32 = arith.constant 0 : i32
    %c0_i32_0 = arith.constant 0 : i32
    return %arg0, %c0_i32 : i32, i32
  }
  func.func @transform_8(%arg0: i32) -> (i32, i32) {
    %c0_i32 = arith.constant 0 : i32
    %c0_i32_0 = arith.constant 0 : i32
    return %arg0, %c0_i32 : i32, i32
  }
}

</mosaic_0001>

<llo_original>
// kernel: tpu_custom_call.1
$region0: #{tpu_custom_call.1}
  #allocation0 [shape = 'u32[]', space=smem, size = 0x4, offset = 0x4, fixed_abs, tag = 'smem constant byte address 0x4 - core index']
  #allocation1 [shape = 'u32[144,128]{1,0:T(1,128)}', space=vmem, size = 0x12000, scoped, tag = 'internal scratch']
  %s0 = inlined_call_operand.vmem [shape: f32[512,64], index: 0, kind: input, shape index: {}]
  %s1 = inlined_call_operand.vmem [shape: f32[64,128], index: 1, kind: input, shape index: {}]
  %s2 = inlined_call_operand.vmem [shape: f32[1,128], index: 2, kind: input, shape index: {}]
  %s3 = inlined_call_operand.vmem [shape: f32[1,128], index: 3, kind: input, shape index: {}]
  %s4 = inlined_call_operand.vmem [shape: f32[64,128], index: 4, kind: input, shape index: {}]
  %s5 = inlined_call_operand.hbm [shape: bf16[512,128], index: 5, kind: output, shape index: {0}]
  %s6 = inlined_call_operand.hbm [shape: f32[1,512], index: 6, kind: output, shape index: {1}]
  %s7 = inlined_call_operand.vmem [shape: f32[512,1], index: 7, kind: output, shape index: {2}]
  %s8 = inlined_call_operand.hbm [shape: f32[512,128], index: 8, kind: output, shape index: {3}]
  %9 = xla_tuple %s5, %s6, %s7, %s8
  %s10 = sld [smem:[#allocation0]]
  $region77: #{tpu_custom_call.1} parent=0
    _
  %s12 = ssub.s32 1, %s10
  %s13 = scalar_select 0, %s12, %s10
  $region1: #{tpu_custom_call.1} parent=0
    #allocation2 [shape = 'u8[131072]{0}', space=vmem, size = 0x20000, scoped, tag = 'output window, operand 0']
    #allocation3 [shape = 's32[2]{0}', space=sflag, size = 0x8, scoped, tag = 'scoped memory for tpu_custom_call.1']
    #allocation4 [shape = 'u8[2048]{0}', space=vmem, size = 0x800, scoped, tag = 'output window, operand 1']
    #allocation5 [shape = 's32[2]{0}', space=sflag, size = 0x8, scoped, tag = 'scoped memory for tpu_custom_call.1']
    #allocation6 [shape = 'u8[262144]{0}', space=vmem, size = 0x40000, scoped, tag = 'output window, operand 3']
    %14 = vsyncpa [#allocation3], 0
    %s15 = scalar_lea.sflag [#allocation3], 1
    %16 = vsyncpa %s15, 0
    %17 = vsyncpa [#allocation5], 0
    %s18 = scalar_lea.sflag [#allocation5], 1
    %19 = vsyncpa %s18, 0
    loop: start=0, step=1, limit=4
    $region2: #{tpu_custom_call.1} parent=1 // loop_pre_header
      _
    $region3: #{tpu_custom_call.1} parent=1 // loop_header
      %s21 = sphi 0, %s25
      %p22 = scmp.ge.s32.totalorder %s21, 4
      %s31 = sphi 0, %s33
      %s34 = sphi 0, %s31
      %s35 = sphi 0, %s34
      %s51 = sphi 0, %s35
      %s55 = sphi 0, %s55
      %s57 = sphi 0, %s55
      %s58 = sphi 0, %s57
      %s72 = sphi 0, %s58
      %s76 = sphi 0, %s76
      %s78 = sphi 0, %s76
      %s79 = sphi 0, %s78
      %s93 = sphi 0, %s79
      %s97 = sphi 0, %s97
      %s99 = sphi 0, %s97
      %s100 = sphi 0, %s99
      %s114 = sphi 0, %s100
      %s118 = sphi 0, %s118
      %s120 = sphi 0, %s118
      %s121 = sphi 0, %s120
      %s135 = sphi 0, %s121
      %s141 = sphi 0, %s143
      %s144 = sphi 0, %s141
      %s145 = sphi 0, %s144
      %s161 = sphi 0, %s145
      %s167 = sphi 0, %s169
      %s170 = sphi 0, %s167
      %s171 = sphi 0, %s170
      %s187 = sphi 0, %s171
      %s193 = sphi 0, %s195
      %s196 = sphi 0, %s193
      %s197 = sphi 0, %s196
      %s213 = sphi 0, %s197
      %s219 = sphi 0, %s221
      %s222 = sphi 0, %s219
      %s223 = sphi 0, %s222
      %s239 = sphi 0, %s223
    $region4: #{tpu_custom_call.1} parent=1 // loop_header_branch
      %24 = sbr.rel (%p22) target = $region8
    $region5: #{tpu_custom_call.1} parent=1 // loop_body
      %s26 = ssub.s32 %s21, 1
      %s27 = ssub.s32 %s21, 2
      %s28 = sadd.s32 %s21, 1
      %s29 = ssub.s32 %s21, %s28
      %p30 = scmp.eq.s32.totalorder %s29, 0
      %s32 = sadd.s32 %s31, 1
      %s33 = scalar_select %p30, %s31, %s32
      %p36 = pneg %p30
      %p37 = scmp.eq.s32.totalorder %s21, 1
      %p38 = por %p36, %p37
      %p39 = scmp.ne.s32.totalorder %s31, %s34
      %p40 = scmp.eq.s32.totalorder %s21, 0
      %p41 = por %p39, %p40
      %p42 = scmp.ne.s32.totalorder %s31, %s34
      %p43 = scmp.eq.s32.totalorder %s26, 1
      %p44 = por %p42, %p43
      %p45 = scmp.ne.s32.totalorder %s34, %s35
      %p46 = scmp.eq.s32.totalorder %s26, 0
      %p47 = por %p45, %p46
      %p48 = scmp.ne.s32.totalorder %s34, %s35
      %p49 = scmp.eq.s32.totalorder %s27, 1
      %p50 = por %p48, %p49
      %p52 = scmp.ne.s32.totalorder %s35, %s51
      %p53 = scmp.eq.s32.totalorder %s27, 0
      %p54 = por %p52, %p53
      %s56 = sadd.s32 %s55, 1
      %p59 = scmp.eq.s32.totalorder %s21, 1
      %p60 = scmp.ne.s32.totalorder %s55, %s57
      %p61 = scmp.eq.s32.totalorder %s21, 0
      %p62 = por %p60, %p61
      %p63 = scmp.ne.s32.totalorder %s55, %s57
      %p64 = scmp.eq.s32.totalorder %s26, 1
      %p65 = por %p63, %p64
      %p66 = scmp.ne.s32.totalorder %s57, %s58
      %p67 = scmp.eq.s32.totalorder %s26, 0
      %p68 = por %p66, %p67
      %p69 = scmp.ne.s32.totalorder %s57, %s58
      %p70 = scmp.eq.s32.totalorder %s27, 1
      %p71 = por %p69, %p70
      %p73 = scmp.ne.s32.totalorder %s58, %s72
      %p74 = scmp.eq.s32.totalorder %s27, 0
      %p75 = por %p73, %p74
      %s77 = sadd.s32 %s76, 1
      %p80 = scmp.eq.s32.totalorder %s21, 1
      %p81 = scmp.ne.s32.totalorder %s76, %s78
      %p82 = scmp.eq.s32.totalorder %s21, 0
      %p83 = por %p81, %p82
      %p84 = scmp.ne.s32.totalorder %s76, %s78
      %p85 = scmp.eq.s32.totalorder %s26, 1
      %p86 = por %p84, %p85
      %p87 = scmp.ne.s32.totalorder %s78, %s79
      %p88 = scmp.eq.s32.totalorder %s26, 0
      %p89 = por %p87, %p88
      %p90 = scmp.ne.s32.totalorder %s78, %s79
      %p91 = scmp.eq.s32.totalorder %s27, 1
      %p92 = por %p90, %p91
      %p94 = scmp.ne.s32.totalorder %s79, %s93
      %p95 = scmp.eq.s32.totalorder %s27, 0
      %p96 = por %p94, %p95
      %s98 = sadd.s32 %s97, 1
      %p101 = scmp.eq.s32.totalorder %s21, 1
      %p102 = scmp.ne.s32.totalorder %s97, %s99
      %p103 = scmp.eq.s32.totalorder %s21, 0
      %p104 = por %p102, %p103
      %p105 = scmp.ne.s32.totalorder %s97, %s99
      %p106 = scmp.eq.s32.totalorder %s26, 1
      %p107 = por %p105, %p106
      %p108 = scmp.ne.s32.totalorder %s99, %s100
      %p109 = scmp.eq.s32.totalorder %s26, 0
      %p110 = por %p108, %p109
      %p111 = scmp.ne.s32.totalorder %s99, %s100
      %p112 = scmp.eq.s32.totalorder %s27, 1
      %p113 = por %p111, %p112
      %p115 = scmp.ne.s32.totalorder %s100, %s114
      %p116 = scmp.eq.s32.totalorder %s27, 0
      %p117 = por %p115, %p116
      %s119 = sadd.s32 %s118, 1
      %p122 = scmp.eq.s32.totalorder %s21, 1
      %p123 = scmp.ne.s32.totalorder %s118, %s120
      %p124 = scmp.eq.s32.totalorder %s21, 0
      %p125 = por %p123, %p124
      %p126 = scmp.ne.s32.totalorder %s118, %s120
      %p127 = scmp.eq.s32.totalorder %s26, 1
      %p128 = por %p126, %p127
      %p129 = scmp.ne.s32.totalorder %s120, %s121
      %p130 = scmp.eq.s32.totalorder %s26, 0
      %p131 = por %p129, %p130
      %p132 = scmp.ne.s32.totalorder %s120, %s121
      %p133 = scmp.eq.s32.totalorder %s27, 1
      %p134 = por %p132, %p133
      %p136 = scmp.ne.s32.totalorder %s121, %s135
      %p137 = scmp.eq.s32.totalorder %s27, 0
      %p138 = por %p136, %p137
      %s139 = ssub.s32 %s21, %s28
      %p140 = scmp.eq.s32.totalorder %s139, 0
      %s142 = sadd.s32 %s141, 1
      %s143 = scalar_select %p140, %s141, %s142
      %p146 = pneg %p140
      %p147 = scmp.eq.s32.totalorder %s21, 1
      %p148 = por %p146, %p147
      %p149 = scmp.ne.s32.totalorder %s141, %s144
      %p150 = scmp.eq.s32.totalorder %s21, 0
      %p151 = por %p149, %p150
      %p152 = scmp.ne.s32.totalorder %s141, %s144
      %p153 = scmp.eq.s32.totalorder %s26, 1
      %p154 = por %p152, %p153
      %p155 = scmp.ne.s32.totalorder %s144, %s145
      %p156 = scmp.eq.s32.totalorder %s26, 0
      %p157 = por %p155, %p156
      %p158 = scmp.ne.s32.totalorder %s144, %s145
      %p159 = scmp.eq.s32.totalorder %s27, 1
      %p160 = por %p158, %p159
      %p162 = scmp.ne.s32.totalorder %s145, %s161
      %p163 = scmp.eq.s32.totalorder %s27, 0
      %p164 = por %p162, %p163
      %s165 = ssub.s32 %s21, %s28
      %p166 = scmp.eq.s32.totalorder %s165, 0
      %s168 = sadd.s32 %s167, 1
      %s169 = scalar_select %p166, %s167, %s168
      %p172 = pneg %p166
      %p173 = scmp.eq.s32.totalorder %s21, 1
      %p174 = por %p172, %p173
      %p175 = scmp.ne.s32.totalorder %s167, %s170
      %p176 = scmp.eq.s32.totalorder %s21, 0
      %p177 = por %p175, %p176
      %p178 = scmp.ne.s32.totalorder %s167, %s170
      %p179 = scmp.eq.s32.totalorder %s26, 1
      %p180 = por %p178, %p179
      %p181 = scmp.ne.s32.totalorder %s170, %s171
      %p182 = scmp.eq.s32.totalorder %s26, 0
      %p183 = por %p181, %p182
      %p184 = scmp.ne.s32.totalorder %s170, %s171
      %p185 = scmp.eq.s32.totalorder %s27, 1
      %p186 = por %p184, %p185
      %p188 = scmp.ne.s32.totalorder %s171, %s187
      %p189 = scmp.eq.s32.totalorder %s27, 0
      %p190 = por %p188, %p189
      %s191 = ssub.s32 %s21, %s28
      %p192 = scmp.eq.s32.totalorder %s191, 0
      %s194 = sadd.s32 %s193, 1
      %s195 = scalar_select %p192, %s193, %s194
      %p198 = pneg %p192
      %p199 = scmp.eq.s32.totalorder %s21, 1
      %p200 = por %p198, %p199
      %p201 = scmp.ne.s32.totalorder %s193, %s196
      %p202 = scmp.eq.s32.totalorder %s21, 0
      %p203 = por %p201, %p202
      %p204 = scmp.ne.s32.totalorder %s193, %s196
      %p205 = scmp.eq.s32.totalorder %s26, 1
      %p206 = por %p204, %p205
      %p207 = scmp.ne.s32.totalorder %s196, %s197
      %p208 = scmp.eq.s32.totalorder %s26, 0
      %p209 = por %p207, %p208
      %p210 = scmp.ne.s32.totalorder %s196, %s197
      %p211 = scmp.eq.s32.totalorder %s27, 1
      %p212 = por %p210, %p211
      %p214 = scmp.ne.s32.totalorder %s197, %s213
      %p215 = scmp.eq.s32.totalorder %s27, 0
      %p216 = por %p214, %p215
      %s217 = ssub.s32 %s21, %s28
      %p218 = scmp.eq.s32.totalorder %s217, 0
      %s220 = sadd.s32 %s219, 1
      %s221 = scalar_select %p218, %s219, %s220
      %p224 = pneg %p218
      %p225 = scmp.eq.s32.totalorder %s21, 1
      %p226 = por %p224, %p225
      %p227 = scmp.ne.s32.totalorder %s219, %s222
      %p228 = scmp.eq.s32.totalorder %s21, 0
      %p229 = por %p227, %p228
      %p230 = scmp.ne.s32.totalorder %s219, %s222
      %p231 = scmp.eq.s32.totalorder %s26, 1
      %p232 = por %p230, %p231
      %p233 = scmp.ne.s32.totalorder %s222, %s223
      %p234 = scmp.eq.s32.totalorder %s26, 0
      %p235 = por %p233, %p234
      %p236 = scmp.ne.s32.totalorder %s222, %s223
      %p237 = scmp.eq.s32.totalorder %s27, 1
      %p238 = por %p236, %p237
      %p240 = scmp.ne.s32.totalorder %s223, %s239
      %p241 = scmp.eq.s32.totalorder %s27, 0
      %p242 = por %p240, %p241
      %p243 = scmp.le.s32.totalorder 1, %s21
      %p244 = scmp.lt.s32.totalorder %s21, 3
      %p245 = pnand %p243, %p244
      %p246 = pneg %p245
      // Predicated region
      $region9: #{tpu_custom_call.1} parent=5 // pred_check
        _
      $region10: #{tpu_custom_call.1} parent=5 // pred_check_branch
        %248 = sbr.rel (%p245) target = $region12
      $region11: #{tpu_custom_call.1} parent=5 // pred_region
        %s249 = ssub.s32 %s21, 1
        // Predicated region
        $region13: #{tpu_custom_call.1} parent=11 // pred_check
          %p250 = pneg %p68
        $region14: #{tpu_custom_call.1} parent=11 // pred_check_branch
          %252 = sbr.rel (%p250) target = $region16
        $region15: #{tpu_custom_call.1} parent=11 // pred_region
          _
        $region16: #{tpu_custom_call.1} parent=11 // pred_fallthru
          _
        // Predicated region
        $region17: #{tpu_custom_call.1} parent=11 // pred_check
          %p253 = pneg %p89
        $region18: #{tpu_custom_call.1} parent=11 // pred_check_branch
          %255 = sbr.rel (%p253) target = $region20
        $region19: #{tpu_custom_call.1} parent=11 // pred_region
          _
        $region20: #{tpu_custom_call.1} parent=11 // pred_fallthru
          _
        // Predicated region
        $region21: #{tpu_custom_call.1} parent=11 // pred_check
          %p256 = pneg %p110
        $region22: #{tpu_custom_call.1} parent=11 // pred_check_branch
          %258 = sbr.rel (%p256) target = $region24
        $region23: #{tpu_custom_call.1} parent=11 // pred_region
          _
        $region24: #{tpu_custom_call.1} parent=11 // pred_fallthru
          _
        // Predicated region
        $region25: #{tpu_custom_call.1} parent=11 // pred_check
          %p259 = pneg %p131
        $region26: #{tpu_custom_call.1} parent=11 // pred_check_branch
          %261 = sbr.rel (%p259) target = $region28
        $region27: #{tpu_custom_call.1} parent=11 // pred_region
          _
        $region28: #{tpu_custom_call.1} parent=11 // pred_fallthru
          _
      $region12: #{tpu_custom_call.1} parent=5 // pred_fallthru
        _
      %p262 = scmp.lt.s32.totalorder %s21, 2
      // Predicated region
      $region29: #{tpu_custom_call.1} parent=5 // pred_check
        %p263 = pneg %p262
      $region30: #{tpu_custom_call.1} parent=5 // pred_check_branch
        %265 = sbr.rel (%p263) target = $region32
      $region31: #{tpu_custom_call.1} parent=5 // pred_region
        // Predicated region
        $region33: #{tpu_custom_call.1} parent=31 // pred_check
          %p266 = pneg %p41
        $region34: #{tpu_custom_call.1} parent=31 // pred_check_branch
          %268 = sbr.rel (%p266) target = $region36
        $region35: #{tpu_custom_call.1} parent=31 // pred_region
          %s269 = smul.u32 32, %s21
          %p270 = scmp.lt.s32.totalorder %s269, 63
          %s271 = scalar_select %p270, %s269, 63
          %s272 = smul.addr %s271, 8
          %s273 = scalar_lea.vmem %s0, %s272
          %s274 = smul.u32 32, %s21
        $region36: #{tpu_custom_call.1} parent=31 // pred_fallthru
          _
      $region32: #{tpu_custom_call.1} parent=5 // pred_fallthru
        _
      %p275 = scmp.le.s32.totalorder 1, %s21
      %p276 = scmp.lt.s32.totalorder %s21, 3
      %p277 = pnand %p275, %p276
      %p278 = pneg %p277
      // Predicated region
      $region37: #{tpu_custom_call.1} parent=5 // pred_check
        _
      $region38: #{tpu_custom_call.1} parent=5 // pred_check_branch
        %280 = sbr.rel (%p277) target = $region40
      $region39: #{tpu_custom_call.1} parent=5 // pred_region
        %s281 = ssub.s32 %s21, 1
        %s282 = smul.u32 32, %s26
        %p283 = scmp.lt.s32.totalorder %s282, 63
        %s284 = scalar_select %p283, %s282, 63
        %s285 = smul.addr %s284, 8
        %s286 = scalar_lea.vmem %s0, %s285
        %p287 = pneg %p47
        %p288 = pneg %p44
        %p289 = pneg %p68
        %p290 = pneg %p65
        %p291 = pneg %p89
        %p292 = pneg %p86
        %p293 = pneg %p110
        %p294 = pneg %p107
        %p295 = pneg %p131
        %p296 = pneg %p128
        %p297 = pneg %p157
        %p298 = pneg %p154
        %s299 = sand.u32 %s144, 1
        %s300 = scalar_lea.sflag [#allocation3], %s299
        %s301 = sand.u32 %s144, 1
        %s302 = smul.addr %s301, 128
        %s303 = scalar_lea.vmem [#allocation2], %s302
        %p304 = pneg %p183
        %p305 = pneg %p180
        %s306 = sand.u32 %s26, 1
        %s307 = scalar_lea.sflag [#allocation5], %s306
        %s308 = sand.u32 %s170, 1
        %s309 = smul.addr %s308, 2
        %s310 = scalar_lea.vmem [#allocation4], %s309
        %p311 = pneg %p209
        %p312 = pneg %p206
        %s313 = smul.u32 32, %s26
        %p314 = scmp.lt.s32.totalorder %s313, 63
        %s315 = scalar_select %p314, %s313, 63
        %s316 = smul.addr %s315, 8
        %s317 = scalar_lea.vmem %s7, %s316
        %p318 = pneg %p235
        %p319 = pneg %p232
        %s320 = sand.u32 %s26, 1
        %s321 = scalar_lea.sflag [#allocation5], %s320
        %s322 = sand.u32 %s222, 1
        %s323 = smul.addr %s322, 256
        %s324 = scalar_lea.vmem [#allocation6], %s323
        %s325 = smul.u32 32, %s26
        %p326 = scmp.lt.s32.totalorder %s325, 63
        %s327 = scalar_select %p326, %s325, 63
        %s328 = smul.addr %s327, 8
        %s329 = scalar_lea.vmem %s0, %s328
        %s330 = smul.u32 32, %s26
        %s331 = smul.u32 32, %s26
        %s332 = smul.u32 2, %s26
        %s333 = smul.u32 32, %s26
        %p334 = scmp.lt.s32.totalorder %s333, 63
        %s335 = scalar_select %p334, %s333, 63
        %s336 = smul.addr %s335, 8
        %s337 = scalar_lea.vmem %s7, %s336
        %s338 = smul.u32 32, %s26
        %s339 = smul.u32 32, %s26
        %v340 = vld [vmem:[%s329] sm:$0xff]
        %v341 = vld [vmem:[%s329 + $0x8] sm:$0xff]
        %v342 = vld [vmem:[%s329 + $0x10] sm:$0xff]
        %v343 = vld [vmem:[%s329 + $0x18] sm:$0xff]
        %v344 = vld [vmem:[%s329 + $0x20] sm:$0xff]
        %v345 = vld [vmem:[%s329 + $0x28] sm:$0xff]
        %v346 = vld [vmem:[%s329 + $0x30] sm:$0xff]
        %v347 = vld [vmem:[%s329 + $0x38] sm:$0xff]
        %v348 = vld [vmem:[%s329 + $0x40] sm:$0xff]
        %v349 = vld [vmem:[%s329 + $0x48] sm:$0xff]
        %v350 = vld [vmem:[%s329 + $0x50] sm:$0xff]
        %v351 = vld [vmem:[%s329 + $0x58] sm:$0xff]
        %v352 = vld [vmem:[%s329 + $0x60] sm:$0xff]
        %v353 = vld [vmem:[%s329 + $0x68] sm:$0xff]
        %v354 = vld [vmem:[%s329 + $0x70] sm:$0xff]
        %v355 = vld [vmem:[%s329 + $0x78] sm:$0xff]
        %v356 = vld [vmem:[%s329 + $0x80] sm:$0xff]
        %v357 = vld [vmem:[%s329 + $0x88] sm:$0xff]
        %v358 = vld [vmem:[%s329 + $0x90] sm:$0xff]
        %v359 = vld [vmem:[%s329 + $0x98] sm:$0xff]
        %v360 = vld [vmem:[%s329 + $0xa0] sm:$0xff]
        %v361 = vld [vmem:[%s329 + $0xa8] sm:$0xff]
        %v362 = vld [vmem:[%s329 + $0xb0] sm:$0xff]
        %v363 = vld [vmem:[%s329 + $0xb8] sm:$0xff]
        %v364 = vld [vmem:[%s329 + $0xc0] sm:$0xff]
        %v365 = vld [vmem:[%s329 + $0xc8] sm:$0xff]
        %v366 = vld [vmem:[%s329 + $0xd0] sm:$0xff]
        %v367 = vld [vmem:[%s329 + $0xd8] sm:$0xff]
        %v368 = vld [vmem:[%s329 + $0xe0] sm:$0xff]
        %v369 = vld [vmem:[%s329 + $0xe8] sm:$0xff]
        %v370 = vld [vmem:[%s329 + $0xf0] sm:$0xff]
        %v371 = vld [vmem:[%s329 + $0xf8] sm:$0xff]
        %v372 = vld [vmem:[%s1] sm:$0xff]
        %v373 = vld [vmem:[%s1 + $0x8] sm:$0xff]
        %v374 = vld [vmem:[%s1 + $0x10] sm:$0xff]
        %v375 = vld [vmem:[%s1 + $0x18] sm:$0xff]
        %v376 = vld [vmem:[%s1 + $0x20] sm:$0xff]
        %v377 = vld [vmem:[%s1 + $0x28] sm:$0xff]
        %v378 = vld [vmem:[%s1 + $0x30] sm:$0xff]
        %v379 = vld [vmem:[%s1 + $0x38] sm:$0xff]
        %vm380 = vcmask 523264
        %v382 = vsel %vm380, %v340, 0
        %v385 = vsel %vm380, %v341, 0
        %v388 = vsel %vm380, %v342, 0
        %v391 = vsel %vm380, %v343, 0
        %v394 = vsel %vm380, %v344, 0
        %v397 = vsel %vm380, %v345, 0
        %v400 = vsel %vm380, %v346, 0
        %v403 = vsel %vm380, %v347, 0
        %v406 = vsel %vm380, %v348, 0
        %v409 = vsel %vm380, %v349, 0
        %v412 = vsel %vm380, %v350, 0
        %v415 = vsel %vm380, %v351, 0
        %v418 = vsel %vm380, %v352, 0
        %v421 = vsel %vm380, %v353, 0
        %v424 = vsel %vm380, %v354, 0
        %v427 = vsel %vm380, %v355, 0
        %v430 = vsel %vm380, %v356, 0
        %v433 = vsel %vm380, %v357, 0
        %v436 = vsel %vm380, %v358, 0
        %v439 = vsel %vm380, %v359, 0
        %v442 = vsel %vm380, %v360, 0
        %v445 = vsel %vm380, %v361, 0
        %v448 = vsel %vm380, %v362, 0
        %v451 = vsel %vm380, %v363, 0
        %v454 = vsel %vm380, %v364, 0
        %v457 = vsel %vm380, %v365, 0
        %v460 = vsel %vm380, %v366, 0
        %v463 = vsel %vm380, %v367, 0
        %v466 = vsel %vm380, %v368, 0
        %v469 = vsel %vm380, %v369, 0
        %v472 = vsel %vm380, %v370, 0
        %v475 = vsel %vm380, %v371, 0
        %477 = vmatprep.subr.mxu0 0.0
        %478 = vmatpush1.msra.mxu0 %v372
        %479 = vmatprep.subr.mxu0 0.0
        %480 = vmatpush1.msra.mxu0 %v373
        %481 = vmatprep.subr.mxu0 0.0
        %482 = vmatpush1.msra.mxu0 %v374
        %483 = vmatprep.subr.mxu0 0.0
        %484 = vmatpush1.msra.mxu0 %v375
        %485 = vmatprep.subr.mxu0 0.0
        %486 = vmatpush1.msra.mxu0 %v376
        %487 = vmatprep.subr.mxu0 0.0
        %488 = vmatpush1.msra.mxu0 %v377
        %489 = vmatprep.subr.mxu0 0.0
        %490 = vmatpush1.msra.mxu0 %v378
        %491 = vmatprep.subr.mxu0 0.0
        %492 = vmatpush1.msra.mxu0 %v379
        %493 = vmatprep.subr.mxu0 0.0
        %494 = vmatpush1.msra.mxu0 0.0
        %495 = vmatprep.subr.mxu0 0.0
        %496 = vmatpush1.msra.mxu0 0.0
        %497 = vmatprep.subr.mxu0 0.0
        %498 = vmatpush1.msra.mxu0 0.0
        %499 = vmatprep.subr.mxu0 0.0
        %500 = vmatpush1.msra.mxu0 0.0
        %501 = vmatprep.subr.mxu0 0.0
        %502 = vmatpush1.msra.mxu0 0.0
        %503 = vmatprep.subr.mxu0 0.0
        %504 = vmatpush1.msra.mxu0 0.0
        %505 = vmatprep.subr.mxu0 0.0
        %506 = vmatpush1.msra.mxu0 0.0
        %507 = vmatprep.subr.mxu0 0.0
        %508 = vmatpush1.msra.mxu0 0.0
        %509 = vmatprep.subr.mxu0 0.0
        %510 = vmatpush1.msra.mxu0 0.0
        %511 = vmatprep.subr.mxu0 0.0
        %512 = vmatpush1.msra.mxu0 0.0
        %513 = vmatprep.subr.mxu0 0.0
        %514 = vmatpush1.msra.mxu0 0.0
        %515 = vmatprep.subr.mxu0 0.0
        %516 = vmatpush1.msra.mxu0 0.0
        %517 = vmatprep.subr.mxu0 0.0
        %518 = vmatpush1.msra.mxu0 0.0
        %519 = vmatprep.subr.mxu0 0.0
        %520 = vmatpush1.msra.mxu0 0.0
        %521 = vmatprep.subr.mxu0 0.0
        %522 = vmatpush1.msra.mxu0 0.0
        %523 = vmatprep.subr.mxu0 0.0
        %524 = vmatpush1.msra.mxu0 0.0
        %525 = vmatprep.subr.mxu0 0.0
        %526 = vmatpush1.msra.mxu0 0.0
        %527 = vmatprep.subr.mxu0 0.0
        %528 = vmatpush1.msra.mxu0 0.0
        %529 = vmatprep.subr.mxu0 0.0
        %530 = vmatpush1.msra.mxu0 0.0
        %531 = vmatprep.subr.mxu0 0.0
        %532 = vmatpush1.msra.mxu0 0.0
        %533 = vmatprep.subr.mxu0 0.0
        %534 = vmatpush1.msra.mxu0 0.0
        %535 = vmatprep.subr.mxu0 0.0
        %536 = vmatpush1.msra.mxu0 0.0
        %537 = vmatprep.subr.mxu0 0.0
        %538 = vmatpush1.msra.mxu0 0.0
        %539 = vmatprep.subr.mxu0 0.0
        %540 = vmatpush1.msra.mxu0 0.0
        %541 = vmatprep.mubr.f32.mxu0 0.0
        %542 = vmatmul.mubr.f32.gmra.mrb[0].mxu0 %v382
        %v543 = vpop.f32.mrb[0].mxu0
        %v544 = vadd.f32 0.0, %v543
        %v545 = vpop.f32.mrb[0].mxu0
        %546 = vmatprep.mubr.f32.mxu0 0.0
        %547 = vmatmul.mubr.f32.gmra.mrb[0].mxu0 %v385
        %v548 = vpop.f32.mrb[0].mxu0
        %v549 = vadd.f32 0.0, %v548
        %v550 = vpop.f32.mrb[0].mxu0
        %551 = vmatprep.mubr.f32.mxu0 0.0
        %552 = vmatmul.mubr.f32.gmra.mrb[0].mxu0 %v388
        %v553 = vpop.f32.mrb[0].mxu0
        %v554 = vadd.f32 0.0, %v553
        %v555 = vpop.f32.mrb[0].mxu0
        %556 = vmatprep.mubr.f32.mxu0 0.0
        %557 = vmatmul.mubr.f32.gmra.mrb[0].mxu0 %v391
        %v558 = vpop.f32.mrb[0].mxu0
        %v559 = vadd.f32 0.0, %v558
        %v560 = vpop.f32.mrb[0].mxu0
        %561 = vmatprep.mubr.f32.mxu0 0.0
        %562 = vmatmul.mubr.f32.gmra.mrb[0].mxu0 %v394
        %v563 = vpop.f32.mrb[0].mxu0
        %v564 = vadd.f32 0.0, %v563
        %v565 = vpop.f32.mrb[0].mxu0
        %566 = vmatprep.mubr.f32.mxu0 0.0
        %567 = vmatmul.mubr.f32.gmra.mrb[0].mxu0 %v397
        %v568 = vpop.f32.mrb[0].mxu0
        %v569 = vadd.f32 0.0, %v568
        %v570 = vpop.f32.mrb[0].mxu0
        %571 = vmatprep.mubr.f32.mxu0 0.0
        %572 = vmatmul.mubr.f32.gmra.mrb[0].mxu0 %v400
        %v573 = vpop.f32.mrb[0].mxu0
        %v574 = vadd.f32 0.0, %v573
        %v575 = vpop.f32.mrb[0].mxu0
        %576 = vmatprep.mubr.f32.mxu0 0.0
        %577 = vmatmul.mubr.f32.gmra.mrb[0].mxu0 %v403
        %v578 = vpop.f32.mrb[0].mxu0
        %v579 = vadd.f32 0.0, %v578
        %v580 = vpop.f32.mrb[0].mxu0
        %581 = vmatprep.mubr.f32.mxu0 0.0
        %582 = vmatmul.mubr.f32.gmra.mrb[0].mxu0 %v406
        %v583 = vpop.f32.mrb[0].mxu0
        %v584 = vadd.f32 0.0, %v583
        %v585 = vpop.f32.mrb[0].mxu0
        %586 = vmatprep.mubr.f32.mxu0 0.0
        %587 = vmatmul.mubr.f32.gmra.mrb[0].mxu0 %v409
        %v588 = vpop.f32.mrb[0].mxu0
        %v589 = vadd.f32 0.0, %v588
        %v590 = vpop.f32.mrb[0].mxu0
        %591 = vmatprep.mubr.f32.mxu0 0.0
        %592 = vmatmul.mubr.f32.gmra.mrb[0].mxu0 %v412
        %v593 = vpop.f32.mrb[0].mxu0
        %v594 = vadd.f32 0.0, %v593
        %v595 = vpop.f32.mrb[0].mxu0
        %596 = vmatprep.mubr.f32.mxu0 0.0
        %597 = vmatmul.mubr.f32.gmra.mrb[0].mxu0 %v415
        %v598 = vpop.f32.mrb[0].mxu0
        %v599 = vadd.f32 0.0, %v598
        %v600 = vpop.f32.mrb[0].mxu0
        %601 = vmatprep.mubr.f32.mxu0 0.0
        %602 = vmatmul.mubr.f32.gmra.mrb[0].mxu0 %v418
        %v603 = vpop.f32.mrb[0].mxu0
        %v604 = vadd.f32 0.0, %v603
        %v605 = vpop.f32.mrb[0].mxu0
        %606 = vmatprep.mubr.f32.mxu0 0.0
        %607 = vmatmul.mubr.f32.gmra.mrb[0].mxu0 %v421
        %v608 = vpop.f32.mrb[0].mxu0
        %v609 = vadd.f32 0.0, %v608
        %v610 = vpop.f32.mrb[0].mxu0
        %611 = vmatprep.mubr.f32.mxu0 0.0
        %612 = vmatmul.mubr.f32.gmra.mrb[0].mxu0 %v424
        %v613 = vpop.f32.mrb[0].mxu0
        %v614 = vadd.f32 0.0, %v613
        %v615 = vpop.f32.mrb[0].mxu0
        %616 = vmatprep.mubr.f32.mxu0 0.0
        %617 = vmatmul.mubr.f32.gmra.mrb[0].mxu0 %v427
        %v618 = vpop.f32.mrb[0].mxu0
        %v619 = vadd.f32 0.0, %v618
        %v620 = vpop.f32.mrb[0].mxu0
        %621 = vmatprep.mubr.f32.mxu0 0.0
        %622 = vmatmul.mubr.f32.gmra.mrb[0].mxu0 %v430
        %v623 = vpop.f32.mrb[0].mxu0
        %v624 = vadd.f32 0.0, %v623
        %v625 = vpop.f32.mrb[0].mxu0
        %626 = vmatprep.mubr.f32.mxu0 0.0
        %627 = vmatmul.mubr.f32.gmra.mrb[0].mxu0 %v433
        %v628 = vpop.f32.mrb[0].mxu0
        %v629 = vadd.f32 0.0, %v628
        %v630 = vpop.f32.mrb[0].mxu0
        %631 = vmatprep.mubr.f32.mxu0 0.0
        %632 = vmatmul.mubr.f32.gmra.mrb[0].mxu0 %v436
        %v633 = vpop.f32.mrb[0].mxu0
        %v634 = vadd.f32 0.0, %v633
        %v635 = vpop.f32.mrb[0].mxu0
        %636 = vmatprep.mubr.f32.mxu0 0.0
        %637 = vmatmul.mubr.f32.gmra.mrb[0].mxu0 %v439
        %v638 = vpop.f32.mrb[0].mxu0
        %v639 = vadd.f32 0.0, %v638
        %v640 = vpop.f32.mrb[0].mxu0
        %641 = vmatprep.mubr.f32.mxu0 0.0
        %642 = vmatmul.mubr.f32.gmra.mrb[0].mxu0 %v442
        %v643 = vpop.f32.mrb[0].mxu0
        %v644 = vadd.f32 0.0, %v643
        %v645 = vpop.f32.mrb[0].mxu0
        %646 = vmatprep.mubr.f32.mxu0 0.0
        %647 = vmatmul.mubr.f32.gmra.mrb[0].mxu0 %v445
        %v648 = vpop.f32.mrb[0].mxu0
        %v649 = vadd.f32 0.0, %v648
        %v650 = vpop.f32.mrb[0].mxu0
        %651 = vmatprep.mubr.f32.mxu0 0.0
        %652 = vmatmul.mubr.f32.gmra.mrb[0].mxu0 %v448
        %v653 = vpop.f32.mrb[0].mxu0
        %v654 = vadd.f32 0.0, %v653
        %v655 = vpop.f32.mrb[0].mxu0
        %656 = vmatprep.mubr.f32.mxu0 0.0
        %657 = vmatmul.mubr.f32.gmra.mrb[0].mxu0 %v451
        %v658 = vpop.f32.mrb[0].mxu0
        %v659 = vadd.f32 0.0, %v658
        %v660 = vpop.f32.mrb[0].mxu0
        %661 = vmatprep.mubr.f32.mxu0 0.0
        %662 = vmatmul.mubr.f32.gmra.mrb[0].mxu0 %v454
        %v663 = vpop.f32.mrb[0].mxu0
        %v664 = vadd.f32 0.0, %v663
        %v665 = vpop.f32.mrb[0].mxu0
        %666 = vmatprep.mubr.f32.mxu0 0.0
        %667 = vmatmul.mubr.f32.gmra.mrb[0].mxu0 %v457
        %v668 = vpop.f32.mrb[0].mxu0
        %v669 = vadd.f32 0.0, %v668
        %v670 = vpop.f32.mrb[0].mxu0
        %671 = vmatprep.mubr.f32.mxu0 0.0
        %672 = vmatmul.mubr.f32.gmra.mrb[0].mxu0 %v460
        %v673 = vpop.f32.mrb[0].mxu0
        %v674 = vadd.f32 0.0, %v673
        %v675 = vpop.f32.mrb[0].mxu0
        %676 = vmatprep.mubr.f32.mxu0 0.0
        %677 = vmatmul.mubr.f32.gmra.mrb[0].mxu0 %v463
        %v678 = vpop.f32.mrb[0].mxu0
        %v679 = vadd.f32 0.0, %v678
        %v680 = vpop.f32.mrb[0].mxu0
        %681 = vmatprep.mubr.f32.mxu0 0.0
        %682 = vmatmul.mubr.f32.gmra.mrb[0].mxu0 %v466
        %v683 = vpop.f32.mrb[0].mxu0
        %v684 = vadd.f32 0.0, %v683
        %v685 = vpop.f32.mrb[0].mxu0
        %686 = vmatprep.mubr.f32.mxu0 0.0
        %687 = vmatmul.mubr.f32.gmra.mrb[0].mxu0 %v469
        %v688 = vpop.f32.mrb[0].mxu0
        %v689 = vadd.f32 0.0, %v688
        %v690 = vpop.f32.mrb[0].mxu0
        %691 = vmatprep.mubr.f32.mxu0 0.0
        %692 = vmatmul.mubr.f32.gmra.mrb[0].mxu0 %v472
        %v693 = vpop.f32.mrb[0].mxu0
        %v694 = vadd.f32 0.0, %v693
        %v695 = vpop.f32.mrb[0].mxu0
        %696 = vmatprep.mubr.f32.mxu0 0.0
        %697 = vmatmul.mubr.f32.gmra.mrb[0].mxu0 %v475
        %v698 = vpop.f32.mrb[0].mxu0
        %v699 = vadd.f32 0.0, %v698
        %v700 = vpop.f32.mrb[0].mxu0
        %701 = vdwg.mxu0
        %v702 = vpack.c.bf16 %v549, %v544
        %v703 = vpack.c.bf16 %v559, %v554
        %v704 = vpack.c.bf16 %v569, %v564
        %v705 = vpack.c.bf16 %v579, %v574
        %v706 = vpack.c.bf16 %v589, %v584
        %v707 = vpack.c.bf16 %v599, %v594
        %v708 = vpack.c.bf16 %v609, %v604
        %v709 = vpack.c.bf16 %v619, %v614
        %v710 = vpack.c.bf16 %v629, %v624
        %v711 = vpack.c.bf16 %v639, %v634
        %v712 = vpack.c.bf16 %v649, %v644
        %v713 = vpack.c.bf16 %v659, %v654
        %v714 = vpack.c.bf16 %v669, %v664
        %v715 = vpack.c.bf16 %v679, %v674
        %v716 = vpack.c.bf16 %v689, %v684
        %v717 = vpack.c.bf16 %v699, %v694
        %v734 = vunpack.c.l.b16 %v702
        %v735 = vunpack.c.h.b16 %v702
        %v736 = vunpack.c.l.b16 %v703
        %v737 = vunpack.c.h.b16 %v703
        %v738 = vunpack.c.l.b16 %v704
        %v739 = vunpack.c.h.b16 %v704
        %v740 = vunpack.c.l.b16 %v705
        %v741 = vunpack.c.h.b16 %v705
        %v742 = vunpack.c.l.b16 %v706
        %v743 = vunpack.c.h.b16 %v706
        %v744 = vunpack.c.l.b16 %v707
        %v745 = vunpack.c.h.b16 %v707
        %v746 = vunpack.c.l.b16 %v708
        %v747 = vunpack.c.h.b16 %v708
        %v748 = vunpack.c.l.b16 %v709
        %v749 = vunpack.c.h.b16 %v709
        %v750 = vunpack.c.l.b16 %v710
        %v751 = vunpack.c.h.b16 %v710
        %v752 = vunpack.c.l.b16 %v711
        %v753 = vunpack.c.h.b16 %v711
        %v754 = vunpack.c.l.b16 %v712
        %v755 = vunpack.c.h.b16 %v712
        %v756 = vunpack.c.l.b16 %v713
        %v757 = vunpack.c.h.b16 %v713
        %v758 = vunpack.c.l.b16 %v714
        %v759 = vunpack.c.h.b16 %v714
        %v760 = vunpack.c.l.b16 %v715
        %v761 = vunpack.c.h.b16 %v715
        %v762 = vunpack.c.l.b16 %v716
        %v763 = vunpack.c.h.b16 %v716
        %v764 = vunpack.c.l.b16 %v717
        %v765 = vunpack.c.h.b16 %v717
        %v766 = vpack.c.b16 %v734, %v734
        %v767 = vpack.c.b16 %v735, %v735
        %v768 = vpack.c.b16 %v736, %v736
        %v769 = vpack.c.b16 %v737, %v737
        %v770 = vpack.c.b16 %v738, %v738
        %v771 = vpack.c.b16 %v739, %v739
        %v772 = vpack.c.b16 %v740, %v740
        %v773 = vpack.c.b16 %v741, %v741
        %v774 = vpack.c.b16 %v742, %v742
        %v775 = vpack.c.b16 %v743, %v743
        %v776 = vpack.c.b16 %v744, %v744
        %v777 = vpack.c.b16 %v745, %v745
        %v778 = vpack.c.b16 %v746, %v746
        %v779 = vpack.c.b16 %v747, %v747
        %v780 = vpack.c.b16 %v748, %v748
        %v781 = vpack.c.b16 %v749, %v749
        %v782 = vpack.c.b16 %v750, %v750
        %v783 = vpack.c.b16 %v751, %v751
        %v784 = vpack.c.b16 %v752, %v752
        %v785 = vpack.c.b16 %v753, %v753
        %v786 = vpack.c.b16 %v754, %v754
        %v787 = vpack.c.b16 %v755, %v755
        %v788 = vpack.c.b16 %v756, %v756
        %v789 = vpack.c.b16 %v757, %v757
        %v790 = vpack.c.b16 %v758, %v758
        %v791 = vpack.c.b16 %v759, %v759
        %v792 = vpack.c.b16 %v760, %v760
        %v793 = vpack.c.b16 %v761, %v761
        %v794 = vpack.c.b16 %v762, %v762
        %v795 = vpack.c.b16 %v763, %v763
        %v796 = vpack.c.b16 %v764, %v764
        %v797 = vpack.c.b16 %v765, %v765
        %830 = vst [vmem:[%s303] sm:$0xf] %v766
        %831 = vst [vmem:[%s303 + $0x4] sm:$0xf] %v767
        %832 = vst [vmem:[%s303 + $0x8] sm:$0xf] %v768
        %833 = vst [vmem:[%s303 + $0xc] sm:$0xf] %v769
        %834 = vst [vmem:[%s303 + $0x10] sm:$0xf] %v770
        %835 = vst [vmem:[%s303 + $0x14] sm:$0xf] %v771
        %836 = vst [vmem:[%s303 + $0x18] sm:$0xf] %v772
        %837 = vst [vmem:[%s303 + $0x1c] sm:$0xf] %v773
        %838 = vst [vmem:[%s303 + $0x20] sm:$0xf] %v774
        %839 = vst [vmem:[%s303 + $0x24] sm:$0xf] %v775
        %840 = vst [vmem:[%s303 + $0x28] sm:$0xf] %v776
        %841 = vst [vmem:[%s303 + $0x2c] sm:$0xf] %v777
        %842 = vst [vmem:[%s303 + $0x30] sm:$0xf] %v778
        %843 = vst [vmem:[%s303 + $0x34] sm:$0xf] %v779
        %844 = vst [vmem:[%s303 + $0x38] sm:$0xf] %v780
        %845 = vst [vmem:[%s303 + $0x3c] sm:$0xf] %v781
        %846 = vst [vmem:[%s303 + $0x40] sm:$0xf] %v782
        %847 = vst [vmem:[%s303 + $0x44] sm:$0xf] %v783
        %848 = vst [vmem:[%s303 + $0x48] sm:$0xf] %v784
        %849 = vst [vmem:[%s303 + $0x4c] sm:$0xf] %v785
        %850 = vst [vmem:[%s303 + $0x50] sm:$0xf] %v786
        %851 = vst [vmem:[%s303 + $0x54] sm:$0xf] %v787
        %852 = vst [vmem:[%s303 + $0x58] sm:$0xf] %v788
        %853 = vst [vmem:[%s303 + $0x5c] sm:$0xf] %v789
        %854 = vst [vmem:[%s303 + $0x60] sm:$0xf] %v790
        %855 = vst [vmem:[%s303 + $0x64] sm:$0xf] %v791
        %856 = vst [vmem:[%s303 + $0x68] sm:$0xf] %v792
        %857 = vst [vmem:[%s303 + $0x6c] sm:$0xf] %v793
        %858 = vst [vmem:[%s303 + $0x70] sm:$0xf] %v794
        %859 = vst [vmem:[%s303 + $0x74] sm:$0xf] %v795
        %860 = vst [vmem:[%s303 + $0x78] sm:$0xf] %v796
        %861 = vst [vmem:[%s303 + $0x7c] sm:$0xf] %v797
        %v862 = vld [vmem:[%s2] sm:$0x1]
        %863 = vmatprep.subr.mxu0 0.0
        %864 = vmatpush1.xpose.msra.mxu0 %v544
        %865 = vmatprep.subr.mxu0 0.0
        %866 = vmatpush1.xpose.msra.mxu0 %v549
        %867 = vmatprep.subr.mxu0 0.0
        %868 = vmatpush1.xpose.msra.mxu0 %v554
        %869 = vmatprep.subr.mxu0 0.0
        %870 = vmatpush1.xpose.msra.mxu0 %v559
        %871 = vmatprep.subr.mxu0 0.0
        %872 = vmatpush1.xpose.msra.mxu0 %v564
        %873 = vmatprep.subr.mxu0 0.0
        %874 = vmatpush1.xpose.msra.mxu0 %v569
        %875 = vmatprep.subr.mxu0 0.0
        %876 = vmatpush1.xpose.msra.mxu0 %v574
        %877 = vmatprep.subr.mxu0 0.0
        %878 = vmatpush1.xpose.msra.mxu0 %v579
        %879 = vmatprep.subr.mxu0 0.0
        %880 = vmatpush1.xpose.msra.mxu0 %v584
        %881 = vmatprep.subr.mxu0 0.0
        %882 = vmatpush1.xpose.msra.mxu0 %v589
        %883 = vmatprep.subr.mxu0 0.0
        %884 = vmatpush1.xpose.msra.mxu0 %v594
        %885 = vmatprep.subr.mxu0 0.0
        %886 = vmatpush1.xpose.msra.mxu0 %v599
        %887 = vmatprep.subr.mxu0 0.0
        %888 = vmatpush1.xpose.msra.mxu0 %v604
        %889 = vmatprep.subr.mxu0 0.0
        %890 = vmatpush1.xpose.msra.mxu0 %v609
        %891 = vmatprep.subr.mxu0 0.0
        %892 = vmatpush1.xpose.msra.mxu0 %v614
        %893 = vmatprep.subr.mxu0 0.0
        %894 = vmatpush1.xpose.msra.mxu0 %v619
        %895 = vmatprep.subr.mxu0 0.0
        %896 = vmatpush1.xpose.msra.mxu0 %v624
        %897 = vmatprep.subr.mxu0 0.0
        %898 = vmatpush1.xpose.msra.mxu0 %v629
        %899 = vmatprep.subr.mxu0 0.0
        %900 = vmatpush1.xpose.msra.mxu0 %v634
        %901 = vmatprep.subr.mxu0 0.0
        %902 = vmatpush1.xpose.msra.mxu0 %v639
        %903 = vmatprep.subr.mxu0 0.0
        %904 = vmatpush1.xpose.msra.mxu0 %v644
        %905 = vmatprep.subr.mxu0 0.0
        %906 = vmatpush1.xpose.msra.mxu0 %v649
        %907 = vmatprep.subr.mxu0 0.0
        %908 = vmatpush1.xpose.msra.mxu0 %v654
        %909 = vmatprep.subr.mxu0 0.0
        %910 = vmatpush1.xpose.msra.mxu0 %v659
        %911 = vmatprep.subr.mxu0 0.0
        %912 = vmatpush1.xpose.msra.mxu0 %v664
        %913 = vmatprep.subr.mxu0 0.0
        %914 = vmatpush1.xpose.msra.mxu0 %v669
        %915 = vmatprep.subr.mxu0 0.0
        %916 = vmatpush1.xpose.msra.mxu0 %v674
        %917 = vmatprep.subr.mxu0 0.0
        %918 = vmatpush1.xpose.msra.mxu0 %v679
        %919 = vmatprep.subr.mxu0 0.0
        %920 = vmatpush1.xpose.msra.mxu0 %v684
        %921 = vmatprep.subr.mxu0 0.0
        %922 = vmatpush1.xpose.msra.mxu0 %v689
        %923 = vmatprep.subr.mxu0 0.0
        %924 = vmatpush1.xpose.msra.mxu0 %v694
        %925 = vmatprep.subr.mxu0 0.0
        %926 = vmatpush1.xpose.msra.mxu0 %v699
        %927 = vmatprep.mubr.f32.mxu0 0.0
        %928 = vmatmul.mubr.f32.gmra.mrb[0].mxu0 %v862
        %v929 = vpop.f32.mrb[0].mxu0
        %v930 = vadd.f32 0.0, %v929
        %v931 = vpop.f32.mrb[0].mxu0
        %v932 = vadd.f32 0.0, %v931
        %933 = vdwg.mxu0
        %v936 = vcombine.low %v930, %v932
        %v938 = vunpack.c.l.s4 1966171168
        %v939 = vunpack.c.0.s8 %v938
        %v940 = vlaneseq
        %v941 = vshrl.u32 %v940, 7
        %v942 = vsub.s32 %v939, %v941
        %v943 = vrot.slane %v936, %v942
        %v945 = vunpack.c.l.s4 1966171168
        %v946 = vunpack.c.0.s8 %v945
        %v947 = vlaneseq
        %v948 = vshrl.u32 %v947, 7
        %v949 = vsub.s32 %v946, %v948
        %v950 = vrot.slane %v943, %v949
        %v952 = vlaneseq
        %vm953 = vcmp.ge.s32.totalorder %v952, 0
        %vm954 = vcmp.lt.s32.totalorder %v952, 256
        %vm955 = vmand %vm953, %vm954
        %956 = vst.msk [vmem:[%s310] sm:$0x3] %vm955, %v950
        %v957 = vld [vmem:[%s3] sm:$0x1]
        %v959 = vlaneseq
        %v960 = vshrl.u32 %v959, 7
        %v961 = vsub.s32 0, %v960
        %v962 = vrot.slane %v957, %v961
        %v964 = vmul.f32 %v544, %v962
        %v965 = vmul.f32 %v549, %v962
        %v966 = vmul.f32 %v554, %v962
        %v967 = vmul.f32 %v559, %v962
        %v968 = vmul.f32 %v564, %v962
        %v969 = vmul.f32 %v569, %v962
        %v970 = vmul.f32 %v574, %v962
        %v971 = vmul.f32 %v579, %v962
        %v972 = vmul.f32 %v584, %v962
        %v973 = vmul.f32 %v589, %v962
        %v974 = vmul.f32 %v594, %v962
        %v975 = vmul.f32 %v599, %v962
        %v976 = vmul.f32 %v604, %v962
        %v977 = vmul.f32 %v609, %v962
        %v978 = vmul.f32 %v614, %v962
        %v979 = vmul.f32 %v619, %v962
        %v980 = vmul.f32 %v624, %v962
        %v981 = vmul.f32 %v629, %v962
        %v982 = vmul.f32 %v634, %v962
        %v983 = vmul.f32 %v639, %v962
        %v984 = vmul.f32 %v644, %v962
        %v985 = vmul.f32 %v649, %v962
        %v986 = vmul.f32 %v654, %v962
        %v987 = vmul.f32 %v659, %v962
        %v988 = vmul.f32 %v664, %v962
        %v989 = vmul.f32 %v669, %v962
        %v990 = vmul.f32 %v674, %v962
        %v991 = vmul.f32 %v679, %v962
        %v992 = vmul.f32 %v684, %v962
        %v993 = vmul.f32 %v689, %v962
        %v994 = vmul.f32 %v694, %v962
        %v995 = vmul.f32 %v699, %v962
        %996 = vadd.xlane.f32.xlu0 %v964
        %v997 = vpop.xlane.xlu0 %996
        %998 = vadd.xlane.f32.xlu0 %v965
        %v999 = vpop.xlane.xlu0 %998
        %1000 = vadd.xlane.f32.xlu0 %v966
        %v1001 = vpop.xlane.xlu0 %1000
        %1002 = vadd.xlane.f32.xlu0 %v967
        %v1003 = vpop.xlane.xlu0 %1002
        %1004 = vadd.xlane.f32.xlu0 %v968
        %v1005 = vpop.xlane.xlu0 %1004
        %1006 = vadd.xlane.f32.xlu0 %v969
        %v1007 = vpop.xlane.xlu0 %1006
        %1008 = vadd.xlane.f32.xlu0 %v970
        %v1009 = vpop.xlane.xlu0 %1008
        %1010 = vadd.xlane.f32.xlu0 %v971
        %v1011 = vpop.xlane.xlu0 %1010
        %1012 = vadd.xlane.f32.xlu0 %v972
        %v1013 = vpop.xlane.xlu0 %1012
        %1014 = vadd.xlane.f32.xlu0 %v973
        %v1015 = vpop.xlane.xlu0 %1014
        %1016 = vadd.xlane.f32.xlu0 %v974
        %v1017 = vpop.xlane.xlu0 %1016
        %1018 = vadd.xlane.f32.xlu0 %v975
        %v1019 = vpop.xlane.xlu0 %1018
        %1020 = vadd.xlane.f32.xlu0 %v976
        %v1021 = vpop.xlane.xlu0 %1020
        %1022 = vadd.xlane.f32.xlu0 %v977
        %v1023 = vpop.xlane.xlu0 %1022
        %1024 = vadd.xlane.f32.xlu0 %v978
        %v1025 = vpop.xlane.xlu0 %1024
        %1026 = vadd.xlane.f32.xlu0 %v979
        %v1027 = vpop.xlane.xlu0 %1026
        %1028 = vadd.xlane.f32.xlu0 %v980
        %v1029 = vpop.xlane.xlu0 %1028
        %1030 = vadd.xlane.f32.xlu0 %v981
        %v1031 = vpop.xlane.xlu0 %1030
        %1032 = vadd.xlane.f32.xlu0 %v982
        %v1033 = vpop.xlane.xlu0 %1032
        %1034 = vadd.xlane.f32.xlu0 %v983
        %v1035 = vpop.xlane.xlu0 %1034
        %1036 = vadd.xlane.f32.xlu0 %v984
        %v1037 = vpop.xlane.xlu0 %1036
        %1038 = vadd.xlane.f32.xlu0 %v985
        %v1039 = vpop.xlane.xlu0 %1038
        %1040 = vadd.xlane.f32.xlu0 %v986
        %v1041 = vpop.xlane.xlu0 %1040
        %1042 = vadd.xlane.f32.xlu0 %v987
        %v1043 = vpop.xlane.xlu0 %1042
        %1044 = vadd.xlane.f32.xlu0 %v988
        %v1045 = vpop.xlane.xlu0 %1044
        %1046 = vadd.xlane.f32.xlu0 %v989
        %v1047 = vpop.xlane.xlu0 %1046
        %1048 = vadd.xlane.f32.xlu0 %v990
        %v1049 = vpop.xlane.xlu0 %1048
        %1050 = vadd.xlane.f32.xlu0 %v991
        %v1051 = vpop.xlane.xlu0 %1050
        %1052 = vadd.xlane.f32.xlu0 %v992
        %v1053 = vpop.xlane.xlu0 %1052
        %1054 = vadd.xlane.f32.xlu0 %v993
        %v1055 = vpop.xlane.xlu0 %1054
        %1056 = vadd.xlane.f32.xlu0 %v994
        %v1057 = vpop.xlane.xlu0 %1056
        %1058 = vadd.xlane.f32.xlu0 %v995
        %v1059 = vpop.xlane.xlu0 %1058
        %vm1060 = vcmask 7168
        %1061 = vst.msk [vmem:[%s337] sm:$0xff] %vm1060, %v997
        %1062 = vst.msk [vmem:[%s337 + $0x8] sm:$0xff] %vm1060, %v999
        %1063 = vst.msk [vmem:[%s337 + $0x10] sm:$0xff] %vm1060, %v1001
        %1064 = vst.msk [vmem:[%s337 + $0x18] sm:$0xff] %vm1060, %v1003
        %1065 = vst.msk [vmem:[%s337 + $0x20] sm:$0xff] %vm1060, %v1005
        %1066 = vst.msk [vmem:[%s337 + $0x28] sm:$0xff] %vm1060, %v1007
        %1067 = vst.msk [vmem:[%s337 + $0x30] sm:$0xff] %vm1060, %v1009
        %1068 = vst.msk [vmem:[%s337 + $0x38] sm:$0xff] %vm1060, %v1011
        %1069 = vst.msk [vmem:[%s337 + $0x40] sm:$0xff] %vm1060, %v1013
        %1070 = vst.msk [vmem:[%s337 + $0x48] sm:$0xff] %vm1060, %v1015
        %1071 = vst.msk [vmem:[%s337 + $0x50] sm:$0xff] %vm1060, %v1017
        %1072 = vst.msk [vmem:[%s337 + $0x58] sm:$0xff] %vm1060, %v1019
        %1073 = vst.msk [vmem:[%s337 + $0x60] sm:$0xff] %vm1060, %v1021
        %1074 = vst.msk [vmem:[%s337 + $0x68] sm:$0xff] %vm1060, %v1023
        %1075 = vst.msk [vmem:[%s337 + $0x70] sm:$0xff] %vm1060, %v1025
        %1076 = vst.msk [vmem:[%s337 + $0x78] sm:$0xff] %vm1060, %v1027
        %1077 = vst.msk [vmem:[%s337 + $0x80] sm:$0xff] %vm1060, %v1029
        %1078 = vst.msk [vmem:[%s337 + $0x88] sm:$0xff] %vm1060, %v1031
        %1079 = vst.msk [vmem:[%s337 + $0x90] sm:$0xff] %vm1060, %v1033
        %1080 = vst.msk [vmem:[%s337 + $0x98] sm:$0xff] %vm1060, %v1035
        %1081 = vst.msk [vmem:[%s337 + $0xa0] sm:$0xff] %vm1060, %v1037
        %1082 = vst.msk [vmem:[%s337 + $0xa8] sm:$0xff] %vm1060, %v1039
        %1083 = vst.msk [vmem:[%s337 + $0xb0] sm:$0xff] %vm1060, %v1041
        %1084 = vst.msk [vmem:[%s337 + $0xb8] sm:$0xff] %vm1060, %v1043
        %1085 = vst.msk [vmem:[%s337 + $0xc0] sm:$0xff] %vm1060, %v1045
        %1086 = vst.msk [vmem:[%s337 + $0xc8] sm:$0xff] %vm1060, %v1047
        %1087 = vst.msk [vmem:[%s337 + $0xd0] sm:$0xff] %vm1060, %v1049
        %1088 = vst.msk [vmem:[%s337 + $0xd8] sm:$0xff] %vm1060, %v1051
        %1089 = vst.msk [vmem:[%s337 + $0xe0] sm:$0xff] %vm1060, %v1053
        %1090 = vst.msk [vmem:[%s337 + $0xe8] sm:$0xff] %vm1060, %v1055
        %1091 = vst.msk [vmem:[%s337 + $0xf0] sm:$0xff] %vm1060, %v1057
        %1092 = vst.msk [vmem:[%s337 + $0xf8] sm:$0xff] %vm1060, %v1059
        %v1093 = vld [vmem:[%s4] sm:$0xff]
        %v1094 = vld [vmem:[%s4 + $0x8] sm:$0xff]
        %v1095 = vld [vmem:[%s4 + $0x10] sm:$0xff]
        %v1096 = vld [vmem:[%s4 + $0x18] sm:$0xff]
        %v1097 = vld [vmem:[%s4 + $0x20] sm:$0xff]
        %v1098 = vld [vmem:[%s4 + $0x28] sm:$0xff]
        %v1099 = vld [vmem:[%s4 + $0x30] sm:$0xff]
        %v1100 = vld [vmem:[%s4 + $0x38] sm:$0xff]
        %1101 = vmatprep.subr.mxu0 0.0
        %1102 = vmatpush1.msra.mxu0 %v1093
        %1103 = vmatprep.subr.mxu0 0.0
        %1104 = vmatpush1.msra.mxu0 %v1094
        %1105 = vmatprep.subr.mxu0 0.0
        %1106 = vmatpush1.msra.mxu0 %v1095
        %1107 = vmatprep.subr.mxu0 0.0
        %1108 = vmatpush1.msra.mxu0 %v1096
        %1109 = vmatprep.subr.mxu0 0.0
        %1110 = vmatpush1.msra.mxu0 %v1097
        %1111 = vmatprep.subr.mxu0 0.0
        %1112 = vmatpush1.msra.mxu0 %v1098
        %1113 = vmatprep.subr.mxu0 0.0
        %1114 = vmatpush1.msra.mxu0 %v1099
        %1115 = vmatprep.subr.mxu0 0.0
        %1116 = vmatpush1.msra.mxu0 %v1100
        %1117 = vmatprep.subr.mxu0 0.0
        %1118 = vmatpush1.msra.mxu0 0.0
        %1119 = vmatprep.subr.mxu0 0.0
        %1120 = vmatpush1.msra.mxu0 0.0
        %1121 = vmatprep.subr.mxu0 0.0
        %1122 = vmatpush1.msra.mxu0 0.0
        %1123 = vmatprep.subr.mxu0 0.0
        %1124 = vmatpush1.msra.mxu0 0.0
        %1125 = vmatprep.subr.mxu0 0.0
        %1126 = vmatpush1.msra.mxu0 0.0
        %1127 = vmatprep.subr.mxu0 0.0
        %1128 = vmatpush1.msra.mxu0 0.0
        %1129 = vmatprep.subr.mxu0 0.0
        %1130 = vmatpush1.msra.mxu0 0.0
        %1131 = vmatprep.subr.mxu0 0.0
        %1132 = vmatpush1.msra.mxu0 0.0
        %1133 = vmatprep.subr.mxu0 0.0
        %1134 = vmatpush1.msra.mxu0 0.0
        %1135 = vmatprep.subr.mxu0 0.0
        %1136 = vmatpush1.msra.mxu0 0.0
        %1137 = vmatprep.subr.mxu0 0.0
        %1138 = vmatpush1.msra.mxu0 0.0
        %1139 = vmatprep.subr.mxu0 0.0
        %1140 = vmatpush1.msra.mxu0 0.0
        %1141 = vmatprep.subr.mxu0 0.0
        %1142 = vmatpush1.msra.mxu0 0.0
        %1143 = vmatprep.subr.mxu0 0.0
        %1144 = vmatpush1.msra.mxu0 0.0
        %1145 = vmatprep.subr.mxu0 0.0
        %1146 = vmatpush1.msra.mxu0 0.0
        %1147 = vmatprep.subr.mxu0 0.0
        %1148 = vmatpush1.msra.mxu0 0.0
        %1149 = vmatprep.subr.mxu0 0.0
        %1150 = vmatpush1.msra.mxu0 0.0
        %1151 = vmatprep.subr.mxu0 0.0
        %1152 = vmatpush1.msra.mxu0 0.0
        %1153 = vmatprep.subr.mxu0 0.0
        %1154 = vmatpush1.msra.mxu0 0.0
        %1155 = vmatprep.subr.mxu0 0.0
        %1156 = vmatpush1.msra.mxu0 0.0
        %1157 = vmatprep.subr.mxu0 0.0
        %1158 = vmatpush1.msra.mxu0 0.0
        %1159 = vmatprep.subr.mxu0 0.0
        %1160 = vmatpush1.msra.mxu0 0.0
        %1161 = vmatprep.subr.mxu0 0.0
        %1162 = vmatpush1.msra.mxu0 0.0
        %1163 = vmatprep.subr.mxu0 0.0
        %1164 = vmatpush1.msra.mxu0 0.0
        %1165 = vmatprep.mubr.f32.mxu0 0.0
        %1166 = vmatmul.mubr.f32.gmra.mrb[0].mxu0 %v382
        %v1167 = vpop.f32.mrb[0].mxu0
        %v1168 = vadd.f32 0.0, %v1167
        %v1169 = vpop.f32.mrb[0].mxu0
        %1170 = vmatprep.mubr.f32.mxu0 0.0
        %1171 = vmatmul.mubr.f32.gmra.mrb[0].mxu0 %v385
        %v1172 = vpop.f32.mrb[0].mxu0
        %v1173 = vadd.f32 0.0, %v1172
        %v1174 = vpop.f32.mrb[0].mxu0
        %1175 = vmatprep.mubr.f32.mxu0 0.0
        %1176 = vmatmul.mubr.f32.gmra.mrb[0].mxu0 %v388
        %v1177 = vpop.f32.mrb[0].mxu0
        %v1178 = vadd.f32 0.0, %v1177
        %v1179 = vpop.f32.mrb[0].mxu0
        %1180 = vmatprep.mubr.f32.mxu0 0.0
        %1181 = vmatmul.mubr.f32.gmra.mrb[0].mxu0 %v391
        %v1182 = vpop.f32.mrb[0].mxu0
        %v1183 = vadd.f32 0.0, %v1182
        %v1184 = vpop.f32.mrb[0].mxu0
        %1185 = vmatprep.mubr.f32.mxu0 0.0
        %1186 = vmatmul.mubr.f32.gmra.mrb[0].mxu0 %v394
        %v1187 = vpop.f32.mrb[0].mxu0
        %v1188 = vadd.f32 0.0, %v1187
        %v1189 = vpop.f32.mrb[0].mxu0
        %1190 = vmatprep.mubr.f32.mxu0 0.0
        %1191 = vmatmul.mubr.f32.gmra.mrb[0].mxu0 %v397
        %v1192 = vpop.f32.mrb[0].mxu0
        %v1193 = vadd.f32 0.0, %v1192
        %v1194 = vpop.f32.mrb[0].mxu0
        %1195 = vmatprep.mubr.f32.mxu0 0.0
        %1196 = vmatmul.mubr.f32.gmra.mrb[0].mxu0 %v400
        %v1197 = vpop.f32.mrb[0].mxu0
        %v1198 = vadd.f32 0.0, %v1197
        %v1199 = vpop.f32.mrb[0].mxu0
        %1200 = vmatprep.mubr.f32.mxu0 0.0
        %1201 = vmatmul.mubr.f32.gmra.mrb[0].mxu0 %v403
        %v1202 = vpop.f32.mrb[0].mxu0
        %v1203 = vadd.f32 0.0, %v1202
        %v1204 = vpop.f32.mrb[0].mxu0
        %1205 = vmatprep.mubr.f32.mxu0 0.0
        %1206 = vmatmul.mubr.f32.gmra.mrb[0].mxu0 %v406
        %v1207 = vpop.f32.mrb[0].mxu0
        %v1208 = vadd.f32 0.0, %v1207
        %v1209 = vpop.f32.mrb[0].mxu0
        %1210 = vmatprep.mubr.f32.mxu0 0.0
        %1211 = vmatmul.mubr.f32.gmra.mrb[0].mxu0 %v409
        %v1212 = vpop.f32.mrb[0].mxu0
        %v1213 = vadd.f32 0.0, %v1212
        %v1214 = vpop.f32.mrb[0].mxu0
        %1215 = vmatprep.mubr.f32.mxu0 0.0
        %1216 = vmatmul.mubr.f32.gmra.mrb[0].mxu0 %v412
        %v1217 = vpop.f32.mrb[0].mxu0
        %v1218 = vadd.f32 0.0, %v1217
        %v1219 = vpop.f32.mrb[0].mxu0
        %1220 = vmatprep.mubr.f32.mxu0 0.0
        %1221 = vmatmul.mubr.f32.gmra.mrb[0].mxu0 %v415
        %v1222 = vpop.f32.mrb[0].mxu0
        %v1223 = vadd.f32 0.0, %v1222
        %v1224 = vpop.f32.mrb[0].mxu0
        %1225 = vmatprep.mubr.f32.mxu0 0.0
        %1226 = vmatmul.mubr.f32.gmra.mrb[0].mxu0 %v418
        %v1227 = vpop.f32.mrb[0].mxu0
        %v1228 = vadd.f32 0.0, %v1227
        %v1229 = vpop.f32.mrb[0].mxu0
        %1230 = vmatprep.mubr.f32.mxu0 0.0
        %1231 = vmatmul.mubr.f32.gmra.mrb[0].mxu0 %v421
        %v1232 = vpop.f32.mrb[0].mxu0
        %v1233 = vadd.f32 0.0, %v1232
        %v1234 = vpop.f32.mrb[0].mxu0
        %1235 = vmatprep.mubr.f32.mxu0 0.0
        %1236 = vmatmul.mubr.f32.gmra.mrb[0].mxu0 %v424
        %v1237 = vpop.f32.mrb[0].mxu0
        %v1238 = vadd.f32 0.0, %v1237
        %v1239 = vpop.f32.mrb[0].mxu0
        %1240 = vmatprep.mubr.f32.mxu0 0.0
        %1241 = vmatmul.mubr.f32.gmra.mrb[0].mxu0 %v427
        %v1242 = vpop.f32.mrb[0].mxu0
        %v1243 = vadd.f32 0.0, %v1242
        %v1244 = vpop.f32.mrb[0].mxu0
        %1245 = vmatprep.mubr.f32.mxu0 0.0
        %1246 = vmatmul.mubr.f32.gmra.mrb[0].mxu0 %v430
        %v1247 = vpop.f32.mrb[0].mxu0
        %v1248 = vadd.f32 0.0, %v1247
        %v1249 = vpop.f32.mrb[0].mxu0
        %1250 = vmatprep.mubr.f32.mxu0 0.0
        %1251 = vmatmul.mubr.f32.gmra.mrb[0].mxu0 %v433
        %v1252 = vpop.f32.mrb[0].mxu0
        %v1253 = vadd.f32 0.0, %v1252
        %v1254 = vpop.f32.mrb[0].mxu0
        %1255 = vmatprep.mubr.f32.mxu0 0.0
        %1256 = vmatmul.mubr.f32.gmra.mrb[0].mxu0 %v436
        %v1257 = vpop.f32.mrb[0].mxu0
        %v1258 = vadd.f32 0.0, %v1257
        %v1259 = vpop.f32.mrb[0].mxu0
        %1260 = vmatprep.mubr.f32.mxu0 0.0
        %1261 = vmatmul.mubr.f32.gmra.mrb[0].mxu0 %v439
        %v1262 = vpop.f32.mrb[0].mxu0
        %v1263 = vadd.f32 0.0, %v1262
        %v1264 = vpop.f32.mrb[0].mxu0
        %1265 = vmatprep.mubr.f32.mxu0 0.0
        %1266 = vmatmul.mubr.f32.gmra.mrb[0].mxu0 %v442
        %v1267 = vpop.f32.mrb[0].mxu0
        %v1268 = vadd.f32 0.0, %v1267
        %v1269 = vpop.f32.mrb[0].mxu0
        %1270 = vmatprep.mubr.f32.mxu0 0.0
        %1271 = vmatmul.mubr.f32.gmra.mrb[0].mxu0 %v445
        %v1272 = vpop.f32.mrb[0].mxu0
        %v1273 = vadd.f32 0.0, %v1272
        %v1274 = vpop.f32.mrb[0].mxu0
        %1275 = vmatprep.mubr.f32.mxu0 0.0
        %1276 = vmatmul.mubr.f32.gmra.mrb[0].mxu0 %v448
        %v1277 = vpop.f32.mrb[0].mxu0
        %v1278 = vadd.f32 0.0, %v1277
        %v1279 = vpop.f32.mrb[0].mxu0
        %1280 = vmatprep.mubr.f32.mxu0 0.0
        %1281 = vmatmul.mubr.f32.gmra.mrb[0].mxu0 %v451
        %v1282 = vpop.f32.mrb[0].mxu0
        %v1283 = vadd.f32 0.0, %v1282
        %v1284 = vpop.f32.mrb[0].mxu0
        %1285 = vmatprep.mubr.f32.mxu0 0.0
        %1286 = vmatmul.mubr.f32.gmra.mrb[0].mxu0 %v454
        %v1287 = vpop.f32.mrb[0].mxu0
        %v1288 = vadd.f32 0.0, %v1287
        %v1289 = vpop.f32.mrb[0].mxu0
        %1290 = vmatprep.mubr.f32.mxu0 0.0
        %1291 = vmatmul.mubr.f32.gmra.mrb[0].mxu0 %v457
        %v1292 = vpop.f32.mrb[0].mxu0
        %v1293 = vadd.f32 0.0, %v1292
        %v1294 = vpop.f32.mrb[0].mxu0
        %1295 = vmatprep.mubr.f32.mxu0 0.0
        %1296 = vmatmul.mubr.f32.gmra.mrb[0].mxu0 %v460
        %v1297 = vpop.f32.mrb[0].mxu0
        %v1298 = vadd.f32 0.0, %v1297
        %v1299 = vpop.f32.mrb[0].mxu0
        %1300 = vmatprep.mubr.f32.mxu0 0.0
        %1301 = vmatmul.mubr.f32.gmra.mrb[0].mxu0 %v463
        %v1302 = vpop.f32.mrb[0].mxu0
        %v1303 = vadd.f32 0.0, %v1302
        %v1304 = vpop.f32.mrb[0].mxu0
        %1305 = vmatprep.mubr.f32.mxu0 0.0
        %1306 = vmatmul.mubr.f32.gmra.mrb[0].mxu0 %v466
        %v1307 = vpop.f32.mrb[0].mxu0
        %v1308 = vadd.f32 0.0, %v1307
        %v1309 = vpop.f32.mrb[0].mxu0
        %1310 = vmatprep.mubr.f32.mxu0 0.0
        %1311 = vmatmul.mubr.f32.gmra.mrb[0].mxu0 %v469
        %v1312 = vpop.f32.mrb[0].mxu0
        %v1313 = vadd.f32 0.0, %v1312
        %v1314 = vpop.f32.mrb[0].mxu0
        %1315 = vmatprep.mubr.f32.mxu0 0.0
        %1316 = vmatmul.mubr.f32.gmra.mrb[0].mxu0 %v472
        %v1317 = vpop.f32.mrb[0].mxu0
        %v1318 = vadd.f32 0.0, %v1317
        %v1319 = vpop.f32.mrb[0].mxu0
        %1320 = vmatprep.mubr.f32.mxu0 0.0
        %1321 = vmatmul.mubr.f32.gmra.mrb[0].mxu0 %v475
        %v1322 = vpop.f32.mrb[0].mxu0
        %v1323 = vadd.f32 0.0, %v1322
        %v1324 = vpop.f32.mrb[0].mxu0
        %1325 = vdwg.mxu0
        %1326 = vst [vmem:[%s324] sm:$0xff] %v1168
        %1327 = vst [vmem:[%s324 + $0x8] sm:$0xff] %v1173
        %1328 = vst [vmem:[%s324 + $0x10] sm:$0xff] %v1178
        %1329 = vst [vmem:[%s324 + $0x18] sm:$0xff] %v1183
        %1330 = vst [vmem:[%s324 + $0x20] sm:$0xff] %v1188
        %1331 = vst [vmem:[%s324 + $0x28] sm:$0xff] %v1193
        %1332 = vst [vmem:[%s324 + $0x30] sm:$0xff] %v1198
        %1333 = vst [vmem:[%s324 + $0x38] sm:$0xff] %v1203
        %1334 = vst [vmem:[%s324 + $0x40] sm:$0xff] %v1208
        %1335 = vst [vmem:[%s324 + $0x48] sm:$0xff] %v1213
        %1336 = vst [vmem:[%s324 + $0x50] sm:$0xff] %v1218
        %1337 = vst [vmem:[%s324 + $0x58] sm:$0xff] %v1223
        %1338 = vst [vmem:[%s324 + $0x60] sm:$0xff] %v1228
        %1339 = vst [vmem:[%s324 + $0x68] sm:$0xff] %v1233
        %1340 = vst [vmem:[%s324 + $0x70] sm:$0xff] %v1238
        %1341 = vst [vmem:[%s324 + $0x78] sm:$0xff] %v1243
        %1342 = vst [vmem:[%s324 + $0x80] sm:$0xff] %v1248
        %1343 = vst [vmem:[%s324 + $0x88] sm:$0xff] %v1253
        %1344 = vst [vmem:[%s324 + $0x90] sm:$0xff] %v1258
        %1345 = vst [vmem:[%s324 + $0x98] sm:$0xff] %v1263
        %1346 = vst [vmem:[%s324 + $0xa0] sm:$0xff] %v1268
        %1347 = vst [vmem:[%s324 + $0xa8] sm:$0xff] %v1273
        %1348 = vst [vmem:[%s324 + $0xb0] sm:$0xff] %v1278
        %1349 = vst [vmem:[%s324 + $0xb8] sm:$0xff] %v1283
        %1350 = vst [vmem:[%s324 + $0xc0] sm:$0xff] %v1288
        %1351 = vst [vmem:[%s324 + $0xc8] sm:$0xff] %v1293
        %1352 = vst [vmem:[%s324 + $0xd0] sm:$0xff] %v1298
        %1353 = vst [vmem:[%s324 + $0xd8] sm:$0xff] %v1303
        %1354 = vst [vmem:[%s324 + $0xe0] sm:$0xff] %v1308
        %1355 = vst [vmem:[%s324 + $0xe8] sm:$0xff] %v1313
        %1356 = vst [vmem:[%s324 + $0xf0] sm:$0xff] %v1318
        %1357 = vst [vmem:[%s324 + $0xf8] sm:$0xff] %v1323
        %s1358 = sand.u32 %s144, 1
        %s1359 = scalar_lea.sflag [#allocation3], %s1358
        %s1360 = sand.u32 %s144, 1
        %s1361 = smul.addr %s1360, 128
        %s1362 = scalar_lea.vmem [#allocation2], %s1361
        %s1363 = sand.u32 %s26, 1
        %s1364 = scalar_lea.sflag [#allocation5], %s1363
        %s1365 = sand.u32 %s170, 1
        %s1366 = smul.addr %s1365, 2
        %s1367 = scalar_lea.vmem [#allocation4], %s1366
        %s1368 = smul.u32 32, %s26
        %p1369 = scmp.lt.s32.totalorder %s1368, 63
        %s1370 = scalar_select %p1369, %s1368, 63
        %s1371 = smul.addr %s1370, 8
        %s1372 = scalar_lea.vmem %s7, %s1371
        %s1373 = sand.u32 %s26, 1
        %s1374 = scalar_lea.sflag [#allocation5], %s1373
        %s1375 = sand.u32 %s222, 1
        %s1376 = smul.addr %s1375, 256
        %s1377 = scalar_lea.vmem [#allocation6], %s1376
        // Predicated region
        $region41: #{tpu_custom_call.1} parent=39 // pred_check
          %p1378 = pneg %p154
        $region42: #{tpu_custom_call.1} parent=39 // pred_check_branch
          %1380 = sbr.rel (%p1378) target = $region44
        $region43: #{tpu_custom_call.1} parent=39 // pred_region
          %s1381 = smul.u32 32, %s26
          %s1383 = ssub.s32 2048, 2048
          %1384 = vsyncadd %s1359, %s1383
          %s1385 = smul.addr %s1381, 64
          %s1386 = scalar_lea.hbm %s5, %s1385
          %s1387 = sshll.u32 %s1362, 4
          %s1388 = int_to_ptr.vmem [resolvable:$true] %s1387
          %1393 = dma.vmem_to_hbm [thread:$0]  %s1388, 2048, %s1386, %s1359, 64, 64, 4
        $region44: #{tpu_custom_call.1} parent=39 // pred_fallthru
          _
        // Predicated region
        $region45: #{tpu_custom_call.1} parent=39 // pred_check
          %p1394 = pneg %p180
        $region46: #{tpu_custom_call.1} parent=39 // pred_check_branch
          %1396 = sbr.rel (%p1394) target = $region48
        $region47: #{tpu_custom_call.1} parent=39 // pred_region
          %s1397 = smul.u32 2, %s26
          %s1399 = ssub.s32 32, 32
          %1400 = vsyncadd %s1364, %s1399
          %s1401 = smul.addr %s1397, 16
          %s1402 = scalar_lea.hbm %s6, %s1401
          %s1404 = sshll.u32 %s1367, 4
          %s1405 = int_to_ptr.vmem [resolvable:$true] %s1404
          %1407 = dma.vmem_to_hbm [thread:$0]  %s1405, 32, %s1402, %s1364
        $region48: #{tpu_custom_call.1} parent=39 // pred_fallthru
          _
        // Predicated region
        $region49: #{tpu_custom_call.1} parent=39 // pred_check
          %p1408 = pneg %p206
        $region50: #{tpu_custom_call.1} parent=39 // pred_check_branch
          %1410 = sbr.rel (%p1408) target = $region52
        $region51: #{tpu_custom_call.1} parent=39 // pred_region
          %s1411 = smul.u32 32, %s26
        $region52: #{tpu_custom_call.1} parent=39 // pred_fallthru
          _
        // Predicated region
        $region53: #{tpu_custom_call.1} parent=39 // pred_check
          %p1412 = pneg %p232
        $region54: #{tpu_custom_call.1} parent=39 // pred_check_branch
          %1414 = sbr.rel (%p1412) target = $region56
        $region55: #{tpu_custom_call.1} parent=39 // pred_region
          %s1415 = smul.u32 32, %s26
          %s1417 = ssub.s32 4096, 4096
          %1418 = vsyncadd %s1374, %s1417
          %s1419 = smul.addr %s1415, 128
          %s1420 = scalar_lea.hbm %s8, %s1419
          %s1421 = sshll.u32 %s1377, 4
          %s1422 = int_to_ptr.vmem [resolvable:$true] %s1421
          %1427 = dma.vmem_to_hbm [thread:$0]  %s1422, 4096, %s1420, %s1374, 128, 128, 8
        $region56: #{tpu_custom_call.1} parent=39 // pred_fallthru
          _
      $region40: #{tpu_custom_call.1} parent=5 // pred_fallthru
        _
      %p1428 = scmp.le.s32.totalorder 2, %s21
      // Predicated region
      $region57: #{tpu_custom_call.1} parent=5 // pred_check
        %p1429 = pneg %p1428
      $region58: #{tpu_custom_call.1} parent=5 // pred_check_branch
        %1431 = sbr.rel (%p1429) target = $region60
      $region59: #{tpu_custom_call.1} parent=5 // pred_region
        %s1432 = ssub.s32 %s21, 2
        // Predicated region
        $region61: #{tpu_custom_call.1} parent=59 // pred_check
          %p1433 = pneg %p160
        $region62: #{tpu_custom_call.1} parent=59 // pred_check_branch
          %1435 = sbr.rel (%p1433) target = $region64
        $region63: #{tpu_custom_call.1} parent=59 // pred_region
          %s1436 = sand.u32 %s145, 1
          %s1437 = scalar_lea.sflag [#allocation3], %s1436
          %s1438 = sand.u32 %s145, 1
          %s1439 = smul.addr %s1438, 128
          %s1440 = scalar_lea.vmem [#allocation2], %s1439
          %1441 = dma.done %s1437, 2048
        $region64: #{tpu_custom_call.1} parent=59 // pred_fallthru
          _
        // Predicated region
        $region65: #{tpu_custom_call.1} parent=59 // pred_check
          %p1442 = pneg %p186
        $region66: #{tpu_custom_call.1} parent=59 // pred_check_branch
          %1444 = sbr.rel (%p1442) target = $region68
        $region67: #{tpu_custom_call.1} parent=59 // pred_region
          %s1445 = sand.u32 %s27, 1
          %s1446 = scalar_lea.sflag [#allocation5], %s1445
          %s1447 = sand.u32 %s171, 1
          %s1448 = smul.addr %s1447, 2
          %s1449 = scalar_lea.vmem [#allocation4], %s1448
          %1450 = dma.done %s1446, 32
        $region68: #{tpu_custom_call.1} parent=59 // pred_fallthru
          _
        // Predicated region
        $region69: #{tpu_custom_call.1} parent=59 // pred_check
          %p1451 = pneg %p212
        $region70: #{tpu_custom_call.1} parent=59 // pred_check_branch
          %1453 = sbr.rel (%p1451) target = $region72
        $region71: #{tpu_custom_call.1} parent=59 // pred_region
          %s1454 = smul.u32 32, %s27
          %p1455 = scmp.lt.s32.totalorder %s1454, 63
          %s1456 = scalar_select %p1455, %s1454, 63
          %s1457 = smul.addr %s1456, 8
          %s1458 = scalar_lea.vmem %s7, %s1457
        $region72: #{tpu_custom_call.1} parent=59 // pred_fallthru
          _
        // Predicated region
        $region73: #{tpu_custom_call.1} parent=59 // pred_check
          %p1459 = pneg %p238
        $region74: #{tpu_custom_call.1} parent=59 // pred_check_branch
          %1461 = sbr.rel (%p1459) target = $region76
        $region75: #{tpu_custom_call.1} parent=59 // pred_region
          %s1462 = sand.u32 %s27, 1
          %s1463 = scalar_lea.sflag [#allocation5], %s1462
          %s1464 = sand.u32 %s223, 1
          %s1465 = smul.addr %s1464, 256
          %s1466 = scalar_lea.vmem [#allocation6], %s1465
          %1467 = dma.done %s1463, 4096
        $region76: #{tpu_custom_call.1} parent=59 // pred_fallthru
          _
      $region60: #{tpu_custom_call.1} parent=5 // pred_fallthru
        _
    $region6: #{tpu_custom_call.1} parent=1 // loop_footer
      %s25 = sadd.s32 1, %s21
    $region7: #{tpu_custom_call.1} parent=1 // loop_footer_branch
      %20 = sbr.rel target = $region3
    $region8: #{tpu_custom_call.1} parent=1 // loop_exit
      _
    %1468 = vsyncpa [#allocation3], 1
    %s1469 = scalar_lea.sflag [#allocation3], 1
    %1470 = vsyncpa %s1469, 1
    %1471 = vsyncpa [#allocation5], 1
    %s1472 = scalar_lea.sflag [#allocation5], 1
    %1473 = vsyncpa %s1472, 1

</llo_original>
